<compile_context>
chip_gen: v7x
topology: tpu7x:2x2x1
jax: 0.10.0
libtpu: 0.0.40
codegen_flags: <defaults>
</compile_context>

<pallas_src>
import functools

import jax
import jax.numpy as jnp
from jax import lax
from jax.experimental import pallas as pl
from jax.experimental.pallas import tpu as pltpu


def _random_shift_kernel(shift_ref, x_ref, o_ref, *, pad, b_tile):
    # shift_ref: SMEM (2*N,) int32, flattened [sx0, sy0, sx1, sy1, ...]
    # x_ref:     VMEM (b_tile, C, H, W) input block (original dtype)
    # o_ref:     VMEM (b_tile, C, H, W) float32 output block
    g = pl.program_id(0)
    _, C, H, W = o_ref.shape

    def body(b, carry):
        img = g * b_tile + b
        sx = shift_ref[2 * img]        # width shift  in {0, ..., 2*pad}
        sy = shift_ref[2 * img + 1]    # height shift in {0, ..., 2*pad}

        # Column selection matrix Cm[k, j] = 1  iff  k == clamp(j + sx - pad, 0, W-1)
        col_k = lax.broadcasted_iota(jnp.int32, (W, W), 0)   # src col
        col_j = lax.broadcasted_iota(jnp.int32, (W, W), 1)   # dst col
        Cm = (col_k == jnp.clip(col_j + sx - pad, 0, W - 1)).astype(jnp.float32)

        # Row selection matrix R[i, k] = 1  iff  k == clamp(i + sy - pad, 0, H-1)
        row_i = lax.broadcasted_iota(jnp.int32, (H, H), 0)   # dst row
        row_k = lax.broadcasted_iota(jnp.int32, (H, H), 1)   # src row
        R = (row_k == jnp.clip(row_i + sy - pad, 0, H - 1)).astype(jnp.float32)

        # Cast to f32 only after the (possibly narrow-dtype) block is in VMEM.
        x = x_ref[b].astype(jnp.float32)                     # (C, H, W)

        # Column shift.  When H is sublane-aligned collapse (C, H) so the MXU
        # sees one (C*H, W) x (W, W) matmul instead of C tiny ones.
        if H % 8 == 0:
            y = jnp.dot(x.reshape(C * H, W), Cm,
                        preferred_element_type=jnp.float32).reshape(C, H, W)
        else:
            y = jnp.einsum("ckw,wj->ckj", x, Cm,
                           preferred_element_type=jnp.float32)

        # Row shift: out[c, i, w] = sum_k R[i, k] * y[c, k, w]
        out = jnp.einsum("ik,ckw->ciw", R, y, preferred_element_type=jnp.float32)

        o_ref[b] = out.astype(o_ref.dtype)
        return carry

    lax.fori_loop(0, b_tile, body, 0, unroll=True)


def _choose_batch_tile(n, c, h, w, in_itemsize,
                       vmem_budget_bytes=20 << 20, max_tile=32):
    """Largest divisor of n that keeps double-buffered in+out under the budget.

    Budget (~20 MiB) is sized for v7x's 64 MiB physical / 32 MiB scoped VMEM;
    v5e/v6e (128 MiB) trivially fit the same tile.  Prefer a grid length >= 2
    so v7x's two TensorCores both get work.
    """
    per_image = 2 * c * h * w * (in_itemsize + 4)   # 2x (in + f32 out) buffers
    cap = int(max(1, min(max_tile, vmem_budget_bytes // per_image)))
    divisors = [d for d in range(1, n + 1) if n % d == 0 and d <= cap]
    best = max(divisors)
    multi = [d for d in divisors if n // d >= 2]
    if multi:
        best = max(multi)
    return best


def random_shifts_aug(x, shifts, pad):
    """x: (N, C, H, W) real dtype; shifts: (N, 2) int32 in [0, 2*pad], cols (sx, sy)."""
    n, c, h, w = x.shape
    assert h == w

    itemsize = jnp.dtype(x.dtype).itemsize
    b_tile = _choose_batch_tile(n, c, h, w, itemsize)
    grid = n // b_tile

    # 1-D scalar-prefetch table: (N, 2) int32 in SMEM would pad to N x 128 words.
    shifts_flat = shifts.astype(jnp.int32).reshape(2 * n)

    kernel = functools.partial(_random_shift_kernel, pad=pad, b_tile=b_tile)

    in_bytes = n * c * h * w * itemsize
    out_bytes = n * c * h * w * 4
    flops = 2 * n * c * h * w * (h + w)   # two selection matmuls per image

    return pl.pallas_call(
        kernel,
        out_shape=jax.ShapeDtypeStruct((n, c, h, w), jnp.float32),
        grid_spec=pltpu.PrefetchScalarGridSpec(
            num_scalar_prefetch=1,
            grid=(grid,),
            in_specs=[
                pl.BlockSpec((b_tile, c, h, w), lambda g, sh: (g, 0, 0, 0)),
            ],
            out_specs=pl.BlockSpec((b_tile, c, h, w), lambda g, sh: (g, 0, 0, 0)),
        ),
        compiler_params=pltpu.CompilerParams(
            dimension_semantics=("parallel",),
            vmem_limit_bytes=32 * 1024 * 1024,
        ),
        cost_estimate=pl.CostEstimate(
            flops=flops, transcendentals=0, bytes_accessed=in_bytes + out_bytes),
    )(shifts_flat, x)


def _reference(x, shifts, pad):
    """Pure-JAX reference of the same semantics (for validation)."""
    x = x.astype(jnp.float32)
    n, c, h, w = x.shape
    i = jnp.arange(h)
    j = jnp.arange(w)
    outs = []
    for b in range(n):
        sx = int(shifts[b, 0])
        sy = int(shifts[b, 1])
        rows = jnp.clip(i + sy - pad, 0, h - 1)
        cols = jnp.clip(j + sx - pad, 0, w - 1)
        outs.append(x[b][:, rows][:, :, cols])
    return jnp.stack(outs, axis=0)


if __name__ == "__main__":
    # TODO(synk): torch.randint inside forward() is replaced by an explicit
    # `shifts` argument (same distribution), since Pallas kernels take RNG as input.
    pad = 4
    key = jax.random.PRNGKey(0)

    ok = True
    for (N, C, H, W) in [(8, 4, 16, 16), (2, 4, 16, 16)]:
        key, kx, ks = jax.random.split(key, 3)
        x = jax.random.normal(kx, (N, C, H, W), dtype=jnp.float32)
        shifts = jax.random.randint(ks, (N, 2), 0, 2 * pad + 1, dtype=jnp.int32)

        out = random_shifts_aug(x, shifts, pad)
        out = jax.block_until_ready(out)

        ref = _reference(x, shifts, pad)
        ok &= (out.shape == (N, C, H, W)) and (out.dtype == jnp.float32)
        ok &= bool(jnp.allclose(out, ref, atol=1e-5, rtol=1e-5))

    assert ok
    print("KERNEL_OK")
</pallas_src>

<mosaic_0001>
module attributes {stable_mosaic.version = 11 : i64} {
  func.func @_random_shift_kernel(%arg0: i32, %arg1: memref<16xi32, #tpu.memory_space<smem>>, %arg2: memref<4x4x16x16xf32, #tpu.memory_space<vmem>>, %arg3: memref<4x4x16x16xf32, #tpu.memory_space<vmem>>) attributes {dimension_semantics = [#tpu.dimension_semantics<parallel>], iteration_bounds = array<i64: 2>, scalar_prefetch = 1 : i64, scratch_operands = 0 : i64, tpu.core_type = #tpu.core_type<tc>, window_params = [{transform_indices = @transform_0, window_bounds = array<i64: 4, 4, 16, 16>}, {transform_indices = @transform_1, window_bounds = array<i64: 4, 4, 16, 16>}]} {
    %c0_i32 = arith.constant 0 : i32
    %c4_i32 = arith.constant 4 : i32
    %0 = arith.muli %arg0, %c4_i32 : i32
    %1 = arith.addi %0, %c0_i32 : i32
    %c2_i32 = arith.constant 2 : i32
    %2 = arith.muli %c2_i32, %1 : i32
    %3 = arith.index_cast %2 : i32 to index
    %4 = memref.load %arg1[%3] : memref<16xi32, #tpu.memory_space<smem>>
    %c2_i32_0 = arith.constant 2 : i32
    %5 = arith.muli %c2_i32_0, %1 : i32
    %c1_i32 = arith.constant 1 : i32
    %6 = arith.addi %5, %c1_i32 : i32
    %7 = arith.index_cast %6 : i32 to index
    %8 = memref.load %arg1[%7] : memref<16xi32, #tpu.memory_space<smem>>
    %9 = tpu.iota {dimensions = array<i32: 0>} : vector<16x16xi32>
    %10 = tpu.iota {dimensions = array<i32: 1>} : vector<16x16xi32>
    %11 = vector.broadcast %4 : i32 to vector<16x16xi32>
    %12 = arith.addi %10, %11 : vector<16x16xi32>
    %c4_i32_1 = arith.constant 4 : i32
    %13 = vector.broadcast %c4_i32_1 : i32 to vector<16x16xi32>
    %14 = arith.subi %12, %13 : vector<16x16xi32>
    %c0_i32_2 = arith.constant 0 : i32
    %c15_i32 = arith.constant 15 : i32
    %15 = vector.broadcast %c0_i32_2 : i32 to vector<16x16xi32>
    %16 = arith.maxsi %15, %14 : vector<16x16xi32>
    %17 = vector.broadcast %c15_i32 : i32 to vector<16x16xi32>
    %18 = arith.minsi %17, %16 : vector<16x16xi32>
    %19 = arith.cmpi eq, %9, %18 : vector<16x16xi32>
    %20 = arith.extui %19 : vector<16x16xi1> to vector<16x16xi32>
    %21 = arith.sitofp %20 : vector<16x16xi32> to vector<16x16xf32>
    %22 = tpu.iota {dimensions = array<i32: 0>} : vector<16x16xi32>
    %23 = tpu.iota {dimensions = array<i32: 1>} : vector<16x16xi32>
    %24 = vector.broadcast %8 : i32 to vector<16x16xi32>
    %25 = arith.addi %22, %24 : vector<16x16xi32>
    %c4_i32_3 = arith.constant 4 : i32
    %26 = vector.broadcast %c4_i32_3 : i32 to vector<16x16xi32>
    %27 = arith.subi %25, %26 : vector<16x16xi32>
    %c0_i32_4 = arith.constant 0 : i32
    %c15_i32_5 = arith.constant 15 : i32
    %28 = vector.broadcast %c0_i32_4 : i32 to vector<16x16xi32>
    %29 = arith.maxsi %28, %27 : vector<16x16xi32>
    %30 = vector.broadcast %c15_i32_5 : i32 to vector<16x16xi32>
    %31 = arith.minsi %30, %29 : vector<16x16xi32>
    %32 = arith.cmpi eq, %23, %31 : vector<16x16xi32>
    %33 = arith.extui %32 : vector<16x16xi1> to vector<16x16xi32>
    %34 = arith.sitofp %33 : vector<16x16xi32> to vector<16x16xf32>
    %35 = arith.index_cast %c0_i32 : i32 to index
    %c0 = arith.constant 0 : index
    %c0_6 = arith.constant 0 : index
    %c0_7 = arith.constant 0 : index
    %36 = vector.load %arg2[%35, %c0, %c0_6, %c0_7] : memref<4x4x16x16xf32, #tpu.memory_space<vmem>>, vector<1x4x16x16xf32>
    %37 = vector.shape_cast %36 : vector<1x4x16x16xf32> to vector<4x16x16xf32>
    %38 = vector.shape_cast %37 : vector<4x16x16xf32> to vector<64x16xf32>
    %cst = arith.constant dense<0.000000e+00> : vector<64x16xf32>
    %39 = tpu.matmul %38, %21, %cst {dimension_numbers = #tpu.dot_dimension_numbers<[1], [0], [0], [1], [0, 0, 1, 1], [], []>} : vector<64x16xf32>, vector<16x16xf32>, vector<64x16xf32> -> vector<64x16xf32>
    %40 = vector.shape_cast %39 : vector<64x16xf32> to vector<4x16x16xf32>
    "tpu.trace_start"() <{level = 10 : i32, message = "ik,ckw->ciw"}> : () -> ()
    %cst_8 = arith.constant dense<0.000000e+00> : vector<4x16x16xf32>
    %41 = tpu.matmul %40, %34, %cst_8 {dimension_numbers = #tpu.dot_dimension_numbers<[1], [1], [0, 2], [0], [0, 0, 0, 2, 1, 0], [], []>} : vector<4x16x16xf32>, vector<16x16xf32>, vector<4x16x16xf32> -> vector<4x16x16xf32>
    %42 = tpu.transpose %41, [0, 2, 1] : vector<4x16x16xf32> -> vector<4x16x16xf32>
    "tpu.trace_stop"() : () -> ()
    %43 = arith.index_cast %c0_i32 : i32 to index
    %c0_9 = arith.constant 0 : index
    %c0_10 = arith.constant 0 : index
    %c0_11 = arith.constant 0 : index
    %44 = vector.load %arg3[%43, %c0_9, %c0_10, %c0_11] : memref<4x4x16x16xf32, #tpu.memory_space<vmem>>, vector<1x4x16x16xf32>
    %45 = vector.shape_cast %44 : vector<1x4x16x16xf32> to vector<4x16x16xf32>
    %46 = vector.shape_cast %42 : vector<4x16x16xf32> to vector<1x4x16x16xf32>
    tpu.vector_store %arg3[%43, %c0_9, %c0_10, %c0_11], %46 {strides = array<i32>} : memref<4x4x16x16xf32, #tpu.memory_space<vmem>>, vector<1x4x16x16xf32>,
    %c1_i32_12 = arith.constant 1 : i32
    %c4_i32_13 = arith.constant 4 : i32
    %47 = arith.muli %arg0, %c4_i32_13 : i32
    %48 = arith.addi %47, %c1_i32_12 : i32
    %c2_i32_14 = arith.constant 2 : i32
    %49 = arith.muli %c2_i32_14, %48 : i32
    %50 = arith.index_cast %49 : i32 to index
    %51 = memref.load %arg1[%50] : memref<16xi32, #tpu.memory_space<smem>>
    %c2_i32_15 = arith.constant 2 : i32
    %52 = arith.muli %c2_i32_15, %48 : i32
    %c1_i32_16 = arith.constant 1 : i32
    %53 = arith.addi %52, %c1_i32_16 : i32
    %54 = arith.index_cast %53 : i32 to index
    %55 = memref.load %arg1[%54] : memref<16xi32, #tpu.memory_space<smem>>
    %56 = tpu.iota {dimensions = array<i32: 0>} : vector<16x16xi32>
    %57 = tpu.iota {dimensions = array<i32: 1>} : vector<16x16xi32>
    %58 = vector.broadcast %51 : i32 to vector<16x16xi32>
    %59 = arith.addi %57, %58 : vector<16x16xi32>
    %c4_i32_17 = arith.constant 4 : i32
    %60 = vector.broadcast %c4_i32_17 : i32 to vector<16x16xi32>
    %61 = arith.subi %59, %60 : vector<16x16xi32>
    %c0_i32_18 = arith.constant 0 : i32
    %c15_i32_19 = arith.constant 15 : i32
    %62 = vector.broadcast %c0_i32_18 : i32 to vector<16x16xi32>
    %63 = arith.maxsi %62, %61 : vector<16x16xi32>
    %64 = vector.broadcast %c15_i32_19 : i32 to vector<16x16xi32>
    %65 = arith.minsi %64, %63 : vector<16x16xi32>
    %66 = arith.cmpi eq, %56, %65 : vector<16x16xi32>
    %67 = arith.extui %66 : vector<16x16xi1> to vector<16x16xi32>
    %68 = arith.sitofp %67 : vector<16x16xi32> to vector<16x16xf32>
    %69 = tpu.iota {dimensions = array<i32: 0>} : vector<16x16xi32>
    %70 = tpu.iota {dimensions = array<i32: 1>} : vector<16x16xi32>
    %71 = vector.broadcast %55 : i32 to vector<16x16xi32>
    %72 = arith.addi %69, %71 : vector<16x16xi32>
    %c4_i32_20 = arith.constant 4 : i32
    %73 = vector.broadcast %c4_i32_20 : i32 to vector<16x16xi32>
    %74 = arith.subi %72, %73 : vector<16x16xi32>
    %c0_i32_21 = arith.constant 0 : i32
    %c15_i32_22 = arith.constant 15 : i32
    %75 = vector.broadcast %c0_i32_21 : i32 to vector<16x16xi32>
    %76 = arith.maxsi %75, %74 : vector<16x16xi32>
    %77 = vector.broadcast %c15_i32_22 : i32 to vector<16x16xi32>
    %78 = arith.minsi %77, %76 : vector<16x16xi32>
    %79 = arith.cmpi eq, %70, %78 : vector<16x16xi32>
    %80 = arith.extui %79 : vector<16x16xi1> to vector<16x16xi32>
    %81 = arith.sitofp %80 : vector<16x16xi32> to vector<16x16xf32>
    %82 = arith.index_cast %c1_i32_12 : i32 to index
    %c0_23 = arith.constant 0 : index
    %c0_24 = arith.constant 0 : index
    %c0_25 = arith.constant 0 : index
    %83 = vector.load %arg2[%82, %c0_23, %c0_24, %c0_25] : memref<4x4x16x16xf32, #tpu.memory_space<vmem>>, vector<1x4x16x16xf32>
    %84 = vector.shape_cast %83 : vector<1x4x16x16xf32> to vector<4x16x16xf32>
    %85 = vector.shape_cast %84 : vector<4x16x16xf32> to vector<64x16xf32>
    %cst_26 = arith.constant dense<0.000000e+00> : vector<64x16xf32>
    %86 = tpu.matmul %85, %68, %cst_26 {dimension_numbers = #tpu.dot_dimension_numbers<[1], [0], [0], [1], [0, 0, 1, 1], [], []>} : vector<64x16xf32>, vector<16x16xf32>, vector<64x16xf32> -> vector<64x16xf32>
    %87 = vector.shape_cast %86 : vector<64x16xf32> to vector<4x16x16xf32>
    "tpu.trace_start"() <{level = 10 : i32, message = "ik,ckw->ciw"}> : () -> ()
    %cst_27 = arith.constant dense<0.000000e+00> : vector<4x16x16xf32>
    %88 = tpu.matmul %87, %81, %cst_27 {dimension_numbers = #tpu.dot_dimension_numbers<[1], [1], [0, 2], [0], [0, 0, 0, 2, 1, 0], [], []>} : vector<4x16x16xf32>, vector<16x16xf32>, vector<4x16x16xf32> -> vector<4x16x16xf32>
    %89 = tpu.transpose %88, [0, 2, 1] : vector<4x16x16xf32> -> vector<4x16x16xf32>
    "tpu.trace_stop"() : () -> ()
    %90 = arith.index_cast %c1_i32_12 : i32 to index
    %c0_28 = arith.constant 0 : index
    %c0_29 = arith.constant 0 : index
    %c0_30 = arith.constant 0 : index
    %91 = vector.load %arg3[%90, %c0_28, %c0_29, %c0_30] : memref<4x4x16x16xf32, #tpu.memory_space<vmem>>, vector<1x4x16x16xf32>
    %92 = vector.shape_cast %91 : vector<1x4x16x16xf32> to vector<4x16x16xf32>
    %93 = vector.shape_cast %89 : vector<4x16x16xf32> to vector<1x4x16x16xf32>
    tpu.vector_store %arg3[%90, %c0_28, %c0_29, %c0_30], %93 {strides = array<i32>} : memref<4x4x16x16xf32, #tpu.memory_space<vmem>>, vector<1x4x16x16xf32>,
    %c2_i32_31 = arith.constant 2 : i32
    %c4_i32_32 = arith.constant 4 : i32
    %94 = arith.muli %arg0, %c4_i32_32 : i32
    %95 = arith.addi %94, %c2_i32_31 : i32
    %c2_i32_33 = arith.constant 2 : i32
    %96 = arith.muli %c2_i32_33, %95 : i32
    %97 = arith.index_cast %96 : i32 to index
    %98 = memref.load %arg1[%97] : memref<16xi32, #tpu.memory_space<smem>>
    %c2_i32_34 = arith.constant 2 : i32
    %99 = arith.muli %c2_i32_34, %95 : i32
    %c1_i32_35 = arith.constant 1 : i32
    %100 = arith.addi %99, %c1_i32_35 : i32
    %101 = arith.index_cast %100 : i32 to index
    %102 = memref.load %arg1[%101] : memref<16xi32, #tpu.memory_space<smem>>
    %103 = tpu.iota {dimensions = array<i32: 0>} : vector<16x16xi32>
    %104 = tpu.iota {dimensions = array<i32: 1>} : vector<16x16xi32>
    %105 = vector.broadcast %98 : i32 to vector<16x16xi32>
    %106 = arith.addi %104, %105 : vector<16x16xi32>
    %c4_i32_36 = arith.constant 4 : i32
    %107 = vector.broadcast %c4_i32_36 : i32 to vector<16x16xi32>
    %108 = arith.subi %106, %107 : vector<16x16xi32>
    %c0_i32_37 = arith.constant 0 : i32
    %c15_i32_38 = arith.constant 15 : i32
    %109 = vector.broadcast %c0_i32_37 : i32 to vector<16x16xi32>
    %110 = arith.maxsi %109, %108 : vector<16x16xi32>
    %111 = vector.broadcast %c15_i32_38 : i32 to vector<16x16xi32>
    %112 = arith.minsi %111, %110 : vector<16x16xi32>
    %113 = arith.cmpi eq, %103, %112 : vector<16x16xi32>
    %114 = arith.extui %113 : vector<16x16xi1> to vector<16x16xi32>
    %115 = arith.sitofp %114 : vector<16x16xi32> to vector<16x16xf32>
    %116 = tpu.iota {dimensions = array<i32: 0>} : vector<16x16xi32>
    %117 = tpu.iota {dimensions = array<i32: 1>} : vector<16x16xi32>
    %118 = vector.broadcast %102 : i32 to vector<16x16xi32>
    %119 = arith.addi %116, %118 : vector<16x16xi32>
    %c4_i32_39 = arith.constant 4 : i32
    %120 = vector.broadcast %c4_i32_39 : i32 to vector<16x16xi32>
    %121 = arith.subi %119, %120 : vector<16x16xi32>
    %c0_i32_40 = arith.constant 0 : i32
    %c15_i32_41 = arith.constant 15 : i32
    %122 = vector.broadcast %c0_i32_40 : i32 to vector<16x16xi32>
    %123 = arith.maxsi %122, %121 : vector<16x16xi32>
    %124 = vector.broadcast %c15_i32_41 : i32 to vector<16x16xi32>
    %125 = arith.minsi %124, %123 : vector<16x16xi32>
    %126 = arith.cmpi eq, %117, %125 : vector<16x16xi32>
    %127 = arith.extui %126 : vector<16x16xi1> to vector<16x16xi32>
    %128 = arith.sitofp %127 : vector<16x16xi32> to vector<16x16xf32>
    %129 = arith.index_cast %c2_i32_31 : i32 to index
    %c0_42 = arith.constant 0 : index
    %c0_43 = arith.constant 0 : index
    %c0_44 = arith.constant 0 : index
    %130 = vector.load %arg2[%129, %c0_42, %c0_43, %c0_44] : memref<4x4x16x16xf32, #tpu.memory_space<vmem>>, vector<1x4x16x16xf32>
    %131 = vector.shape_cast %130 : vector<1x4x16x16xf32> to vector<4x16x16xf32>
    %132 = vector.shape_cast %131 : vector<4x16x16xf32> to vector<64x16xf32>
    %cst_45 = arith.constant dense<0.000000e+00> : vector<64x16xf32>
    %133 = tpu.matmul %132, %115, %cst_45 {dimension_numbers = #tpu.dot_dimension_numbers<[1], [0], [0], [1], [0, 0, 1, 1], [], []>} : vector<64x16xf32>, vector<16x16xf32>, vector<64x16xf32> -> vector<64x16xf32>
    %134 = vector.shape_cast %133 : vector<64x16xf32> to vector<4x16x16xf32>
    "tpu.trace_start"() <{level = 10 : i32, message = "ik,ckw->ciw"}> : () -> ()
    %cst_46 = arith.constant dense<0.000000e+00> : vector<4x16x16xf32>
    %135 = tpu.matmul %134, %128, %cst_46 {dimension_numbers = #tpu.dot_dimension_numbers<[1], [1], [0, 2], [0], [0, 0, 0, 2, 1, 0], [], []>} : vector<4x16x16xf32>, vector<16x16xf32>, vector<4x16x16xf32> -> vector<4x16x16xf32>
    %136 = tpu.transpose %135, [0, 2, 1] : vector<4x16x16xf32> -> vector<4x16x16xf32>
    "tpu.trace_stop"() : () -> ()
    %137 = arith.index_cast %c2_i32_31 : i32 to index
    %c0_47 = arith.constant 0 : index
    %c0_48 = arith.constant 0 : index
    %c0_49 = arith.constant 0 : index
    %138 = vector.load %arg3[%137, %c0_47, %c0_48, %c0_49] : memref<4x4x16x16xf32, #tpu.memory_space<vmem>>, vector<1x4x16x16xf32>
    %139 = vector.shape_cast %138 : vector<1x4x16x16xf32> to vector<4x16x16xf32>
    %140 = vector.shape_cast %136 : vector<4x16x16xf32> to vector<1x4x16x16xf32>
    tpu.vector_store %arg3[%137, %c0_47, %c0_48, %c0_49], %140 {strides = array<i32>} : memref<4x4x16x16xf32, #tpu.memory_space<vmem>>, vector<1x4x16x16xf32>,
    %c3_i32 = arith.constant 3 : i32
    %c4_i32_50 = arith.constant 4 : i32
    %141 = arith.muli %arg0, %c4_i32_50 : i32
    %142 = arith.addi %141, %c3_i32 : i32
    %c2_i32_51 = arith.constant 2 : i32
    %143 = arith.muli %c2_i32_51, %142 : i32
    %144 = arith.index_cast %143 : i32 to index
    %145 = memref.load %arg1[%144] : memref<16xi32, #tpu.memory_space<smem>>
    %c2_i32_52 = arith.constant 2 : i32
    %146 = arith.muli %c2_i32_52, %142 : i32
    %c1_i32_53 = arith.constant 1 : i32
    %147 = arith.addi %146, %c1_i32_53 : i32
    %148 = arith.index_cast %147 : i32 to index
    %149 = memref.load %arg1[%148] : memref<16xi32, #tpu.memory_space<smem>>
    %150 = tpu.iota {dimensions = array<i32: 0>} : vector<16x16xi32>
    %151 = tpu.iota {dimensions = array<i32: 1>} : vector<16x16xi32>
    %152 = vector.broadcast %145 : i32 to vector<16x16xi32>
    %153 = arith.addi %151, %152 : vector<16x16xi32>
    %c4_i32_54 = arith.constant 4 : i32
    %154 = vector.broadcast %c4_i32_54 : i32 to vector<16x16xi32>
    %155 = arith.subi %153, %154 : vector<16x16xi32>
    %c0_i32_55 = arith.constant 0 : i32
    %c15_i32_56 = arith.constant 15 : i32
    %156 = vector.broadcast %c0_i32_55 : i32 to vector<16x16xi32>
    %157 = arith.maxsi %156, %155 : vector<16x16xi32>
    %158 = vector.broadcast %c15_i32_56 : i32 to vector<16x16xi32>
    %159 = arith.minsi %158, %157 : vector<16x16xi32>
    %160 = arith.cmpi eq, %150, %159 : vector<16x16xi32>
    %161 = arith.extui %160 : vector<16x16xi1> to vector<16x16xi32>
    %162 = arith.sitofp %161 : vector<16x16xi32> to vector<16x16xf32>
    %163 = tpu.iota {dimensions = array<i32: 0>} : vector<16x16xi32>
    %164 = tpu.iota {dimensions = array<i32: 1>} : vector<16x16xi32>
    %165 = vector.broadcast %149 : i32 to vector<16x16xi32>
    %166 = arith.addi %163, %165 : vector<16x16xi32>
    %c4_i32_57 = arith.constant 4 : i32
    %167 = vector.broadcast %c4_i32_57 : i32 to vector<16x16xi32>
    %168 = arith.subi %166, %167 : vector<16x16xi32>
    %c0_i32_58 = arith.constant 0 : i32
    %c15_i32_59 = arith.constant 15 : i32
    %169 = vector.broadcast %c0_i32_58 : i32 to vector<16x16xi32>
    %170 = arith.maxsi %169, %168 : vector<16x16xi32>
    %171 = vector.broadcast %c15_i32_59 : i32 to vector<16x16xi32>
    %172 = arith.minsi %171, %170 : vector<16x16xi32>
    %173 = arith.cmpi eq, %164, %172 : vector<16x16xi32>
    %174 = arith.extui %173 : vector<16x16xi1> to vector<16x16xi32>
    %175 = arith.sitofp %174 : vector<16x16xi32> to vector<16x16xf32>
    %176 = arith.index_cast %c3_i32 : i32 to index
    %c0_60 = arith.constant 0 : index
    %c0_61 = arith.constant 0 : index
    %c0_62 = arith.constant 0 : index
    %177 = vector.load %arg2[%176, %c0_60, %c0_61, %c0_62] : memref<4x4x16x16xf32, #tpu.memory_space<vmem>>, vector<1x4x16x16xf32>
    %178 = vector.shape_cast %177 : vector<1x4x16x16xf32> to vector<4x16x16xf32>
    %179 = vector.shape_cast %178 : vector<4x16x16xf32> to vector<64x16xf32>
    %cst_63 = arith.constant dense<0.000000e+00> : vector<64x16xf32>
    %180 = tpu.matmul %179, %162, %cst_63 {dimension_numbers = #tpu.dot_dimension_numbers<[1], [0], [0], [1], [0, 0, 1, 1], [], []>} : vector<64x16xf32>, vector<16x16xf32>, vector<64x16xf32> -> vector<64x16xf32>
    %181 = vector.shape_cast %180 : vector<64x16xf32> to vector<4x16x16xf32>
    "tpu.trace_start"() <{level = 10 : i32, message = "ik,ckw->ciw"}> : () -> ()
    %cst_64 = arith.constant dense<0.000000e+00> : vector<4x16x16xf32>
    %182 = tpu.matmul %181, %175, %cst_64 {dimension_numbers = #tpu.dot_dimension_numbers<[1], [1], [0, 2], [0], [0, 0, 0, 2, 1, 0], [], []>} : vector<4x16x16xf32>, vector<16x16xf32>, vector<4x16x16xf32> -> vector<4x16x16xf32>
    %183 = tpu.transpose %182, [0, 2, 1] : vector<4x16x16xf32> -> vector<4x16x16xf32>
    "tpu.trace_stop"() : () -> ()
    %184 = arith.index_cast %c3_i32 : i32 to index
    %c0_65 = arith.constant 0 : index
    %c0_66 = arith.constant 0 : index
    %c0_67 = arith.constant 0 : index
    %185 = vector.load %arg3[%184, %c0_65, %c0_66, %c0_67] : memref<4x4x16x16xf32, #tpu.memory_space<vmem>>, vector<1x4x16x16xf32>
    %186 = vector.shape_cast %185 : vector<1x4x16x16xf32> to vector<4x16x16xf32>
    %187 = vector.shape_cast %183 : vector<4x16x16xf32> to vector<1x4x16x16xf32>
    tpu.vector_store %arg3[%184, %c0_65, %c0_66, %c0_67], %187 {strides = array<i32>} : memref<4x4x16x16xf32, #tpu.memory_space<vmem>>, vector<1x4x16x16xf32>,
    %c4_i32_68 = arith.constant 4 : i32
    return
  }
  func.func @transform_0(%arg0: i32, %arg1: memref<16xi32, #tpu.memory_space<smem>>) -> (i32, i32, i32, i32) {
    %c0_i32 = arith.constant 0 : i32
    %c0_i32_0 = arith.constant 0 : i32
    %c0_i32_1 = arith.constant 0 : i32
    %c0_i32_2 = arith.constant 0 : i32
    return %arg0, %c0_i32, %c0_i32_0, %c0_i32_1 : i32, i32, i32, i32
  }
  func.func @transform_1(%arg0: i32, %arg1: memref<16xi32, #tpu.memory_space<smem>>) -> (i32, i32, i32, i32) {
    %c0_i32 = arith.constant 0 : i32
    %c0_i32_0 = arith.constant 0 : i32
    %c0_i32_1 = arith.constant 0 : i32
    %c0_i32_2 = arith.constant 0 : i32
    return %arg0, %c0_i32, %c0_i32_0, %c0_i32_1 : i32, i32, i32, i32
  }
}

</mosaic_0001>

<llo_original>
// kernel: tpu_custom_call.1
$region0: #{tpu_custom_call.1}
  #allocation0 [shape = 'u32[]', space=smem, size = 0x4, offset = 0x4, fixed_abs, tag = 'smem constant byte address 0x4 - core index']
  #allocation1 [shape = 'u32[144,128]{1,0:T(1,128)}', space=vmem, size = 0x12000, scoped, tag = 'internal scratch']
  #allocation2 [shape = 's32[1]{0}', space=sflag, size = 0x4, scoped, tag = 'scoped memory for tpu_custom_call.1']
  #allocation3 [shape = 'u8[512]{0}', space=smem, size = 0x200, scoped, tag = 'prefetched SMEM operand 0']
  %s0 = inlined_call_operand.hbm [shape: s32[16], index: 0, kind: input, shape index: {}]
  %s1 = inlined_call_operand.hbm [shape: f32[8,4,16,16], index: 1, kind: input, shape index: {}]
  %s2 = inlined_call_operand.hbm [shape: f32[8,4,16,16], index: 2, kind: output, shape index: {}]
  %s3 = sld [smem:[#allocation0]]
  $region41: #{tpu_custom_call.1} parent=0
    _
  %s5 = ssub.s32 1, %s3
  %s6 = scalar_select 0, %s5, %s3
  %8 = dma.hbm_to_smem %s0, 16, [#allocation3], [#allocation2]
  %9 = dma.done [#allocation2], 16
  %10 = sfence
  $region1: #{tpu_custom_call.1} parent=0
    #allocation4 [shape = 'u8[262144]{0}', space=vmem, size = 0x40000, scoped, tag = 'input window, operand 1']
    #allocation5 [shape = 's32[2]{0}', space=sflag, size = 0x8, scoped, tag = 'scoped memory for tpu_custom_call.1']
    #allocation6 [shape = 's32[2]{0}', space=sflag, size = 0x8, scoped, tag = 'scoped memory for tpu_custom_call.1']
    #allocation7 [shape = 'u8[262144]{0}', space=vmem, size = 0x40000, scoped, tag = 'output window, operand 0']
    %11 = vsyncpa [#allocation5], 0
    %s12 = scalar_lea.sflag [#allocation5], 1
    %13 = vsyncpa %s12, 0
    %14 = vsyncpa [#allocation6], 0
    %s15 = scalar_lea.sflag [#allocation6], 1
    %16 = vsyncpa %s15, 0
    loop: start=0, step=1, limit=4
    $region2: #{tpu_custom_call.1} parent=1 // loop_pre_header
      _
    $region3: #{tpu_custom_call.1} parent=1 // loop_header
      %s18 = sphi 0, %s22
      %p19 = scmp.ge.s32.totalorder %s18, 4
      %s28 = sphi 0, %s30
      %s31 = sphi 0, %s28
      %s32 = sphi 0, %s31
      %s48 = sphi 0, %s32
      %s54 = sphi 0, %s56
      %s57 = sphi 0, %s54
      %s58 = sphi 0, %s57
      %s74 = sphi 0, %s58
    $region4: #{tpu_custom_call.1} parent=1 // loop_header_branch
      %21 = sbr.rel (%p19) target = $region8
    $region5: #{tpu_custom_call.1} parent=1 // loop_body
      %s23 = ssub.s32 %s18, 1
      %s24 = ssub.s32 %s18, 2
      %s25 = sadd.s32 %s18, 1
      %s26 = ssub.s32 %s18, %s25
      %p27 = scmp.eq.s32.totalorder %s26, 0
      %s29 = sadd.s32 %s28, 1
      %s30 = scalar_select %p27, %s28, %s29
      %p33 = pneg %p27
      %p34 = scmp.eq.s32.totalorder %s18, 1
      %p35 = por %p33, %p34
      %p36 = scmp.ne.s32.totalorder %s28, %s31
      %p37 = scmp.eq.s32.totalorder %s18, 0
      %p38 = por %p36, %p37
      %p39 = scmp.ne.s32.totalorder %s28, %s31
      %p40 = scmp.eq.s32.totalorder %s23, 1
      %p41 = por %p39, %p40
      %p42 = scmp.ne.s32.totalorder %s31, %s32
      %p43 = scmp.eq.s32.totalorder %s23, 0
      %p44 = por %p42, %p43
      %p45 = scmp.ne.s32.totalorder %s31, %s32
      %p46 = scmp.eq.s32.totalorder %s24, 1
      %p47 = por %p45, %p46
      %p49 = scmp.ne.s32.totalorder %s32, %s48
      %p50 = scmp.eq.s32.totalorder %s24, 0
      %p51 = por %p49, %p50
      %s52 = ssub.s32 %s18, %s25
      %p53 = scmp.eq.s32.totalorder %s52, 0
      %s55 = sadd.s32 %s54, 1
      %s56 = scalar_select %p53, %s54, %s55
      %p59 = pneg %p53
      %p60 = scmp.eq.s32.totalorder %s18, 1
      %p61 = por %p59, %p60
      %p62 = scmp.ne.s32.totalorder %s54, %s57
      %p63 = scmp.eq.s32.totalorder %s18, 0
      %p64 = por %p62, %p63
      %p65 = scmp.ne.s32.totalorder %s54, %s57
      %p66 = scmp.eq.s32.totalorder %s23, 1
      %p67 = por %p65, %p66
      %p68 = scmp.ne.s32.totalorder %s57, %s58
      %p69 = scmp.eq.s32.totalorder %s23, 0
      %p70 = por %p68, %p69
      %p71 = scmp.ne.s32.totalorder %s57, %s58
      %p72 = scmp.eq.s32.totalorder %s24, 1
      %p73 = por %p71, %p72
      %p75 = scmp.ne.s32.totalorder %s58, %s74
      %p76 = scmp.eq.s32.totalorder %s24, 0
      %p77 = por %p75, %p76
      %p78 = scmp.le.s32.totalorder 1, %s18
      %p79 = scmp.lt.s32.totalorder %s18, 3
      %p80 = pnand %p78, %p79
      %p81 = pneg %p80
      // Predicated region
      $region9: #{tpu_custom_call.1} parent=5 // pred_check
        _
      $region10: #{tpu_custom_call.1} parent=5 // pred_check_branch
        %83 = sbr.rel (%p80) target = $region12
      $region11: #{tpu_custom_call.1} parent=5 // pred_region
        %s84 = ssub.s32 %s18, 1
      $region12: #{tpu_custom_call.1} parent=5 // pred_fallthru
        _
      %p85 = scmp.lt.s32.totalorder %s18, 2
      // Predicated region
      $region13: #{tpu_custom_call.1} parent=5 // pred_check
        %p86 = pneg %p85
      $region14: #{tpu_custom_call.1} parent=5 // pred_check_branch
        %88 = sbr.rel (%p86) target = $region16
      $region15: #{tpu_custom_call.1} parent=5 // pred_region
        // Predicated region
        $region17: #{tpu_custom_call.1} parent=15 // pred_check
          %p89 = pneg %p38
        $region18: #{tpu_custom_call.1} parent=15 // pred_check_branch
          %91 = sbr.rel (%p89) target = $region20
        $region19: #{tpu_custom_call.1} parent=15 // pred_region
          %s92 = sand.u32 %s28, 1
          %s93 = scalar_lea.sflag [#allocation5], %s92
          %s94 = sand.u32 %s28, 1
          %s95 = smul.addr %s94, 256
          %s96 = scalar_lea.vmem [#allocation4], %s95
          %s97 = smul.u32 4, %s18
          %s99 = ssub.s32 4096, 4096
          %100 = vsyncadd %s93, %s99
          %s101 = smul.addr %s97, 8
          %s102 = smul.addr %s101, 128
          %s103 = scalar_lea.hbm %s1, %s102
          %s104 = sshll.u32 %s96, 4
          %s105 = int_to_ptr.vmem [resolvable:$true] %s104
          %110 = dma.hbm_to_vmem [thread:$0]  %s103, 4096, %s105, %s93, 128, 128, 8
        $region20: #{tpu_custom_call.1} parent=15 // pred_fallthru
          _
      $region16: #{tpu_custom_call.1} parent=5 // pred_fallthru
        _
      %p111 = scmp.le.s32.totalorder 1, %s18
      %p112 = scmp.lt.s32.totalorder %s18, 3
      %p113 = pnand %p111, %p112
      %p114 = pneg %p113
      // Predicated region
      $region21: #{tpu_custom_call.1} parent=5 // pred_check
        _
      $region22: #{tpu_custom_call.1} parent=5 // pred_check_branch
        %116 = sbr.rel (%p113) target = $region24
      $region23: #{tpu_custom_call.1} parent=5 // pred_region
        %s117 = ssub.s32 %s18, 1
        %s118 = sand.u32 %s31, 1
        %s119 = scalar_lea.sflag [#allocation5], %s118
        %s120 = sand.u32 %s31, 1
        %s121 = smul.addr %s120, 256
        %s122 = scalar_lea.vmem [#allocation4], %s121
        // Predicated region
        $region25: #{tpu_custom_call.1} parent=23 // pred_check
          %p123 = pneg %p44
        $region26: #{tpu_custom_call.1} parent=23 // pred_check_branch
          %125 = sbr.rel (%p123) target = $region28
        $region27: #{tpu_custom_call.1} parent=23 // pred_region
          %126 = dma.done %s119, 4096
        $region28: #{tpu_custom_call.1} parent=23 // pred_fallthru
          _
        %s127 = sand.u32 %s31, 1
        %s128 = scalar_lea.sflag [#allocation5], %s127
        %s129 = sand.u32 %s31, 1
        %s130 = smul.addr %s129, 256
        %s131 = scalar_lea.vmem [#allocation4], %s130
        %p132 = pneg %p44
        %p133 = pneg %p41
        %p134 = pneg %p70
        %p135 = pneg %p67
        %s136 = sand.u32 %s57, 1
        %s137 = scalar_lea.sflag [#allocation6], %s136
        %s138 = sand.u32 %s57, 1
        %s139 = smul.addr %s138, 256
        %s140 = scalar_lea.vmem [#allocation7], %s139
        %s141 = smul.u32 4, %s23
        %s142 = smul.u32 4, %s23
        %s143 = smul.u32 %s23, 8
        %s144 = sld [smem:[#allocation3 + %s143]]
        %s145 = sadd.s32 %s143, 1
        %s146 = sld [smem:[#allocation3 + %s145]]
        %v147 = vlaneseq
        %v148 = vshrl.u32 %v147, 7
        %v149 = vadd.s32 %v148, 8
        %v150 = vlaneseq
        %v151 = vand.u32 %v150, 127
        %v152 = vstv %s144
        %v153 = vadd.s32 %v151, %v152
        %v154 = vsub.s32 %v153, 4
        %vm155 = vcmp.gt.s32.totalorder %v154, 0
        %v156 = vsel %vm155, %v154, 0
        %vm157 = vcmp.lt.s32.totalorder %v156, 15
        %v158 = vsel %vm157, %v156, 15
        %vm159 = vcmp.eq.s32.totalorder %v148, %v158
        %vm160 = vcmp.eq.s32.totalorder %v149, %v158
        %v161 = vsel %vm159, 1, 0
        %v162 = vsel %vm160, 1, 0
        %v163 = vcvt.s32.f32 %v161
        %v164 = vcvt.s32.f32 %v162
        %v165 = vstv %s146
        %v166 = vadd.s32 %v148, %v165
        %v167 = vadd.s32 %v149, %v165
        %v168 = vsub.s32 %v166, 4
        %v169 = vsub.s32 %v167, 4
        %vm170 = vcmp.gt.s32.totalorder %v168, 0
        %v171 = vsel %vm170, %v168, 0
        %vm172 = vcmp.gt.s32.totalorder %v169, 0
        %v173 = vsel %vm172, %v169, 0
        %vm174 = vcmp.lt.s32.totalorder %v171, 15
        %v175 = vsel %vm174, %v171, 15
        %vm176 = vcmp.lt.s32.totalorder %v173, 15
        %v177 = vsel %vm176, %v173, 15
        %vm178 = vcmp.eq.s32.totalorder %v151, %v175
        %vm179 = vcmp.eq.s32.totalorder %v151, %v177
        %v180 = vsel %vm178, 1, 0
        %v181 = vsel %vm179, 1, 0
        %v182 = vcvt.s32.f32 %v180
        %v183 = vcvt.s32.f32 %v181
        %v184 = vld [vmem:[%s122] sm:$0xff]
        %v185 = vld [vmem:[%s122 + $0x8] sm:$0xff]
        %v186 = vld [vmem:[%s122 + $0x10] sm:$0xff]
        %v187 = vld [vmem:[%s122 + $0x18] sm:$0xff]
        %v188 = vld [vmem:[%s122 + $0x20] sm:$0xff]
        %v189 = vld [vmem:[%s122 + $0x28] sm:$0xff]
        %v190 = vld [vmem:[%s122 + $0x30] sm:$0xff]
        %v191 = vld [vmem:[%s122 + $0x38] sm:$0xff]
        %vm192 = vcmask 130048
        %v194 = vsel %vm192, %v184, 0
        %v197 = vsel %vm192, %v185, 0
        %v200 = vsel %vm192, %v186, 0
        %v203 = vsel %vm192, %v187, 0
        %v206 = vsel %vm192, %v188, 0
        %v209 = vsel %vm192, %v189, 0
        %v212 = vsel %vm192, %v190, 0
        %v215 = vsel %vm192, %v191, 0
        %217 = vmatprep.subr.mxu0 0.0
        %218 = vmatpush1.msra.mxu0 %v163
        %219 = vmatprep.subr.mxu0 0.0
        %220 = vmatpush1.msra.mxu0 %v164
        %221 = vmatprep.subr.mxu0 0.0
        %222 = vmatpush1.msra.mxu0 0.0
        %223 = vmatprep.subr.mxu0 0.0
        %224 = vmatpush1.msra.mxu0 0.0
        %225 = vmatprep.subr.mxu0 0.0
        %226 = vmatpush1.msra.mxu0 0.0
        %227 = vmatprep.subr.mxu0 0.0
        %228 = vmatpush1.msra.mxu0 0.0
        %229 = vmatprep.subr.mxu0 0.0
        %230 = vmatpush1.msra.mxu0 0.0
        %231 = vmatprep.subr.mxu0 0.0
        %232 = vmatpush1.msra.mxu0 0.0
        %233 = vmatprep.subr.mxu0 0.0
        %234 = vmatpush1.msra.mxu0 0.0
        %235 = vmatprep.subr.mxu0 0.0
        %236 = vmatpush1.msra.mxu0 0.0
        %237 = vmatprep.subr.mxu0 0.0
        %238 = vmatpush1.msra.mxu0 0.0
        %239 = vmatprep.subr.mxu0 0.0
        %240 = vmatpush1.msra.mxu0 0.0
        %241 = vmatprep.subr.mxu0 0.0
        %242 = vmatpush1.msra.mxu0 0.0
        %243 = vmatprep.subr.mxu0 0.0
        %244 = vmatpush1.msra.mxu0 0.0
        %245 = vmatprep.subr.mxu0 0.0
        %246 = vmatpush1.msra.mxu0 0.0
        %247 = vmatprep.subr.mxu0 0.0
        %248 = vmatpush1.msra.mxu0 0.0
        %249 = vmatprep.subr.mxu0 0.0
        %250 = vmatpush1.msra.mxu0 0.0
        %251 = vmatprep.subr.mxu0 0.0
        %252 = vmatpush1.msra.mxu0 0.0
        %253 = vmatprep.subr.mxu0 0.0
        %254 = vmatpush1.msra.mxu0 0.0
        %255 = vmatprep.subr.mxu0 0.0
        %256 = vmatpush1.msra.mxu0 0.0
        %257 = vmatprep.subr.mxu0 0.0
        %258 = vmatpush1.msra.mxu0 0.0
        %259 = vmatprep.subr.mxu0 0.0
        %260 = vmatpush1.msra.mxu0 0.0
        %261 = vmatprep.subr.mxu0 0.0
        %262 = vmatpush1.msra.mxu0 0.0
        %263 = vmatprep.subr.mxu0 0.0
        %264 = vmatpush1.msra.mxu0 0.0
        %265 = vmatprep.subr.mxu0 0.0
        %266 = vmatpush1.msra.mxu0 0.0
        %267 = vmatprep.subr.mxu0 0.0
        %268 = vmatpush1.msra.mxu0 0.0
        %269 = vmatprep.subr.mxu0 0.0
        %270 = vmatpush1.msra.mxu0 0.0
        %271 = vmatprep.subr.mxu0 0.0
        %272 = vmatpush1.msra.mxu0 0.0
        %273 = vmatprep.subr.mxu0 0.0
        %274 = vmatpush1.msra.mxu0 0.0
        %275 = vmatprep.subr.mxu0 0.0
        %276 = vmatpush1.msra.mxu0 0.0
        %277 = vmatprep.subr.mxu0 0.0
        %278 = vmatpush1.msra.mxu0 0.0
        %279 = vmatprep.subr.mxu0 0.0
        %280 = vmatpush1.msra.mxu0 0.0
        %281 = vmatprep.mubr.f32.mxu0 0.0
        %282 = vmatmul.mubr.f32.gmra.mrb[0].mxu0 %v194
        %v283 = vpop.f32.mrb[0].mxu0
        %v284 = vadd.f32 0.0, %v283
        %v285 = vpop.f32.mrb[0].mxu0
        %286 = vmatprep.mubr.f32.mxu0 0.0
        %287 = vmatmul.mubr.f32.gmra.mrb[0].mxu0 %v197
        %v288 = vpop.f32.mrb[0].mxu0
        %v289 = vadd.f32 0.0, %v288
        %v290 = vpop.f32.mrb[0].mxu0
        %291 = vmatprep.mubr.f32.mxu0 0.0
        %292 = vmatmul.mubr.f32.gmra.mrb[0].mxu0 %v200
        %v293 = vpop.f32.mrb[0].mxu0
        %v294 = vadd.f32 0.0, %v293
        %v295 = vpop.f32.mrb[0].mxu0
        %296 = vmatprep.mubr.f32.mxu0 0.0
        %297 = vmatmul.mubr.f32.gmra.mrb[0].mxu0 %v203
        %v298 = vpop.f32.mrb[0].mxu0
        %v299 = vadd.f32 0.0, %v298
        %v300 = vpop.f32.mrb[0].mxu0
        %301 = vmatprep.mubr.f32.mxu0 0.0
        %302 = vmatmul.mubr.f32.gmra.mrb[0].mxu0 %v206
        %v303 = vpop.f32.mrb[0].mxu0
        %v304 = vadd.f32 0.0, %v303
        %v305 = vpop.f32.mrb[0].mxu0
        %306 = vmatprep.mubr.f32.mxu0 0.0
        %307 = vmatmul.mubr.f32.gmra.mrb[0].mxu0 %v209
        %v308 = vpop.f32.mrb[0].mxu0
        %v309 = vadd.f32 0.0, %v308
        %v310 = vpop.f32.mrb[0].mxu0
        %311 = vmatprep.mubr.f32.mxu0 0.0
        %312 = vmatmul.mubr.f32.gmra.mrb[0].mxu0 %v212
        %v313 = vpop.f32.mrb[0].mxu0
        %v314 = vadd.f32 0.0, %v313
        %v315 = vpop.f32.mrb[0].mxu0
        %316 = vmatprep.mubr.f32.mxu0 0.0
        %317 = vmatmul.mubr.f32.gmra.mrb[0].mxu0 %v215
        %v318 = vpop.f32.mrb[0].mxu0
        %v319 = vadd.f32 0.0, %v318
        %v320 = vpop.f32.mrb[0].mxu0
        %321 = vdwg.mxu0
        %322 = vxpose.xlu0.b32.start [1/16] %v284, 128
        %323 = vxpose.xlu0.b32.cont [2/16] %v289, 128
        %324 = vxpose.xlu0.b32.cont [3/16] 0.0, 128
        %325 = vxpose.xlu0.b32.cont [4/16] 0.0, 128
        %326 = vxpose.xlu0.b32.cont [5/16] 0.0, 128
        %327 = vxpose.xlu0.b32.cont [6/16] 0.0, 128
        %328 = vxpose.xlu0.b32.cont [7/16] 0.0, 128
        %329 = vxpose.xlu0.b32.cont [8/16] 0.0, 128
        %330 = vxpose.xlu0.b32.cont [9/16] 0.0, 128
        %331 = vxpose.xlu0.b32.cont [10/16] 0.0, 128
        %332 = vxpose.xlu0.b32.cont [11/16] 0.0, 128
        %333 = vxpose.xlu0.b32.cont [12/16] 0.0, 128
        %334 = vxpose.xlu0.b32.cont [13/16] 0.0, 128
        %335 = vxpose.xlu0.b32.cont [14/16] 0.0, 128
        %336 = vxpose.xlu0.b32.cont [15/16] 0.0, 128
        %337 = vxpose.xlu0.b32.end [16/16] 0.0, 128
        %v338 = vpop.trf.xlu0
        %v339 = vpop.trf.xlu0
        %v340 = vpop.trf.xlu0
        %v341 = vpop.trf.xlu0
        %v342 = vpop.trf.xlu0
        %v343 = vpop.trf.xlu0
        %v344 = vpop.trf.xlu0
        %v345 = vpop.trf.xlu0
        %v346 = vpop.trf.xlu0
        %v347 = vpop.trf.xlu0
        %v348 = vpop.trf.xlu0
        %v349 = vpop.trf.xlu0
        %v350 = vpop.trf.xlu0
        %v351 = vpop.trf.xlu0
        %v352 = vpop.trf.xlu0
        %v353 = vpop.trf.xlu0
        %354 = vxpose.xlu0.b32.start [1/16] %v294, 128
        %355 = vxpose.xlu0.b32.cont [2/16] %v299, 128
        %356 = vxpose.xlu0.b32.cont [3/16] 0.0, 128
        %357 = vxpose.xlu0.b32.cont [4/16] 0.0, 128
        %358 = vxpose.xlu0.b32.cont [5/16] 0.0, 128
        %359 = vxpose.xlu0.b32.cont [6/16] 0.0, 128
        %360 = vxpose.xlu0.b32.cont [7/16] 0.0, 128
        %361 = vxpose.xlu0.b32.cont [8/16] 0.0, 128
        %362 = vxpose.xlu0.b32.cont [9/16] 0.0, 128
        %363 = vxpose.xlu0.b32.cont [10/16] 0.0, 128
        %364 = vxpose.xlu0.b32.cont [11/16] 0.0, 128
        %365 = vxpose.xlu0.b32.cont [12/16] 0.0, 128
        %366 = vxpose.xlu0.b32.cont [13/16] 0.0, 128
        %367 = vxpose.xlu0.b32.cont [14/16] 0.0, 128
        %368 = vxpose.xlu0.b32.cont [15/16] 0.0, 128
        %369 = vxpose.xlu0.b32.end [16/16] 0.0, 128
        %v370 = vpop.trf.xlu0
        %v371 = vpop.trf.xlu0
        %v372 = vpop.trf.xlu0
        %v373 = vpop.trf.xlu0
        %v374 = vpop.trf.xlu0
        %v375 = vpop.trf.xlu0
        %v376 = vpop.trf.xlu0
        %v377 = vpop.trf.xlu0
        %v378 = vpop.trf.xlu0
        %v379 = vpop.trf.xlu0
        %v380 = vpop.trf.xlu0
        %v381 = vpop.trf.xlu0
        %v382 = vpop.trf.xlu0
        %v383 = vpop.trf.xlu0
        %v384 = vpop.trf.xlu0
        %v385 = vpop.trf.xlu0
        %386 = vxpose.xlu0.b32.start [1/16] %v304, 128
        %387 = vxpose.xlu0.b32.cont [2/16] %v309, 128
        %388 = vxpose.xlu0.b32.cont [3/16] 0.0, 128
        %389 = vxpose.xlu0.b32.cont [4/16] 0.0, 128
        %390 = vxpose.xlu0.b32.cont [5/16] 0.0, 128
        %391 = vxpose.xlu0.b32.cont [6/16] 0.0, 128
        %392 = vxpose.xlu0.b32.cont [7/16] 0.0, 128
        %393 = vxpose.xlu0.b32.cont [8/16] 0.0, 128
        %394 = vxpose.xlu0.b32.cont [9/16] 0.0, 128
        %395 = vxpose.xlu0.b32.cont [10/16] 0.0, 128
        %396 = vxpose.xlu0.b32.cont [11/16] 0.0, 128
        %397 = vxpose.xlu0.b32.cont [12/16] 0.0, 128
        %398 = vxpose.xlu0.b32.cont [13/16] 0.0, 128
        %399 = vxpose.xlu0.b32.cont [14/16] 0.0, 128
        %400 = vxpose.xlu0.b32.cont [15/16] 0.0, 128
        %401 = vxpose.xlu0.b32.end [16/16] 0.0, 128
        %v402 = vpop.trf.xlu0
        %v403 = vpop.trf.xlu0
        %v404 = vpop.trf.xlu0
        %v405 = vpop.trf.xlu0
        %v406 = vpop.trf.xlu0
        %v407 = vpop.trf.xlu0
        %v408 = vpop.trf.xlu0
        %v409 = vpop.trf.xlu0
        %v410 = vpop.trf.xlu0
        %v411 = vpop.trf.xlu0
        %v412 = vpop.trf.xlu0
        %v413 = vpop.trf.xlu0
        %v414 = vpop.trf.xlu0
        %v415 = vpop.trf.xlu0
        %v416 = vpop.trf.xlu0
        %v417 = vpop.trf.xlu0
        %418 = vxpose.xlu0.b32.start [1/16] %v314, 128
        %419 = vxpose.xlu0.b32.cont [2/16] %v319, 128
        %420 = vxpose.xlu0.b32.cont [3/16] 0.0, 128
        %421 = vxpose.xlu0.b32.cont [4/16] 0.0, 128
        %422 = vxpose.xlu0.b32.cont [5/16] 0.0, 128
        %423 = vxpose.xlu0.b32.cont [6/16] 0.0, 128
        %424 = vxpose.xlu0.b32.cont [7/16] 0.0, 128
        %425 = vxpose.xlu0.b32.cont [8/16] 0.0, 128
        %426 = vxpose.xlu0.b32.cont [9/16] 0.0, 128
        %427 = vxpose.xlu0.b32.cont [10/16] 0.0, 128
        %428 = vxpose.xlu0.b32.cont [11/16] 0.0, 128
        %429 = vxpose.xlu0.b32.cont [12/16] 0.0, 128
        %430 = vxpose.xlu0.b32.cont [13/16] 0.0, 128
        %431 = vxpose.xlu0.b32.cont [14/16] 0.0, 128
        %432 = vxpose.xlu0.b32.cont [15/16] 0.0, 128
        %433 = vxpose.xlu0.b32.end [16/16] 0.0, 128
        %v434 = vpop.trf.xlu0
        %v435 = vpop.trf.xlu0
        %v436 = vpop.trf.xlu0
        %v437 = vpop.trf.xlu0
        %v438 = vpop.trf.xlu0
        %v439 = vpop.trf.xlu0
        %v440 = vpop.trf.xlu0
        %v441 = vpop.trf.xlu0
        %v442 = vpop.trf.xlu0
        %v443 = vpop.trf.xlu0
        %v444 = vpop.trf.xlu0
        %v445 = vpop.trf.xlu0
        %v446 = vpop.trf.xlu0
        %v447 = vpop.trf.xlu0
        %v448 = vpop.trf.xlu0
        %v449 = vpop.trf.xlu0
        %v451 = vsel %vm192, %v338, 0
        %v454 = vsel %vm192, %v339, 0
        %v457 = vsel %vm192, %v370, 0
        %v460 = vsel %vm192, %v371, 0
        %v463 = vsel %vm192, %v402, 0
        %v466 = vsel %vm192, %v403, 0
        %v469 = vsel %vm192, %v434, 0
        %v472 = vsel %vm192, %v435, 0
        %v475 = vsel %vm192, %v182, 0
        %v478 = vsel %vm192, %v183, 0
        %480 = vmatprep.subr.mxu0 0.0
        %481 = vmatpush1.xpose.msra.mxu0 %v475
        %482 = vmatprep.subr.mxu0 0.0
        %483 = vmatpush1.xpose.msra.mxu0 %v478
        %484 = vmatprep.subr.mxu0 0.0
        %485 = vmatpush1.xpose.msra.mxu0 0.0
        %486 = vmatprep.subr.mxu0 0.0
        %487 = vmatpush1.xpose.msra.mxu0 0.0
        %488 = vmatprep.subr.mxu0 0.0
        %489 = vmatpush1.xpose.msra.mxu0 0.0
        %490 = vmatprep.subr.mxu0 0.0
        %491 = vmatpush1.xpose.msra.mxu0 0.0
        %492 = vmatprep.subr.mxu0 0.0
        %493 = vmatpush1.xpose.msra.mxu0 0.0
        %494 = vmatprep.subr.mxu0 0.0
        %495 = vmatpush1.xpose.msra.mxu0 0.0
        %496 = vmatprep.subr.mxu0 0.0
        %497 = vmatpush1.xpose.msra.mxu0 0.0
        %498 = vmatprep.subr.mxu0 0.0
        %499 = vmatpush1.xpose.msra.mxu0 0.0
        %500 = vmatprep.subr.mxu0 0.0
        %501 = vmatpush1.xpose.msra.mxu0 0.0
        %502 = vmatprep.subr.mxu0 0.0
        %503 = vmatpush1.xpose.msra.mxu0 0.0
        %504 = vmatprep.subr.mxu0 0.0
        %505 = vmatpush1.xpose.msra.mxu0 0.0
        %506 = vmatprep.subr.mxu0 0.0
        %507 = vmatpush1.xpose.msra.mxu0 0.0
        %508 = vmatprep.subr.mxu0 0.0
        %509 = vmatpush1.xpose.msra.mxu0 0.0
        %510 = vmatprep.subr.mxu0 0.0
        %511 = vmatpush1.xpose.msra.mxu0 0.0
        %512 = vmatprep.subr.mxu0 0.0
        %513 = vmatpush1.xpose.msra.mxu0 0.0
        %514 = vmatprep.subr.mxu0 0.0
        %515 = vmatpush1.xpose.msra.mxu0 0.0
        %516 = vmatprep.subr.mxu0 0.0
        %517 = vmatpush1.xpose.msra.mxu0 0.0
        %518 = vmatprep.subr.mxu0 0.0
        %519 = vmatpush1.xpose.msra.mxu0 0.0
        %520 = vmatprep.subr.mxu0 0.0
        %521 = vmatpush1.xpose.msra.mxu0 0.0
        %522 = vmatprep.subr.mxu0 0.0
        %523 = vmatpush1.xpose.msra.mxu0 0.0
        %524 = vmatprep.subr.mxu0 0.0
        %525 = vmatpush1.xpose.msra.mxu0 0.0
        %526 = vmatprep.subr.mxu0 0.0
        %527 = vmatpush1.xpose.msra.mxu0 0.0
        %528 = vmatprep.subr.mxu0 0.0
        %529 = vmatpush1.xpose.msra.mxu0 0.0
        %530 = vmatprep.subr.mxu0 0.0
        %531 = vmatpush1.xpose.msra.mxu0 0.0
        %532 = vmatprep.subr.mxu0 0.0
        %533 = vmatpush1.xpose.msra.mxu0 0.0
        %534 = vmatprep.subr.mxu0 0.0
        %535 = vmatpush1.xpose.msra.mxu0 0.0
        %536 = vmatprep.subr.mxu0 0.0
        %537 = vmatpush1.xpose.msra.mxu0 0.0
        %538 = vmatprep.subr.mxu0 0.0
        %539 = vmatpush1.xpose.msra.mxu0 0.0
        %540 = vmatprep.subr.mxu0 0.0
        %541 = vmatpush1.xpose.msra.mxu0 0.0
        %542 = vmatprep.subr.mxu0 0.0
        %543 = vmatpush1.xpose.msra.mxu0 0.0
        %544 = vmatprep.mubr.f32.mxu0 0.0
        %545 = vmatmul.mubr.f32.gmra.mrb[0].mxu0 %v451
        %v546 = vpop.f32.mrb[0].mxu0
        %v547 = vadd.f32 0.0, %v546
        %v548 = vpop.f32.mrb[0].mxu0
        %549 = vmatprep.mubr.f32.mxu0 0.0
        %550 = vmatmul.mubr.f32.gmra.mrb[0].mxu0 %v454
        %v551 = vpop.f32.mrb[0].mxu0
        %v552 = vadd.f32 0.0, %v551
        %v553 = vpop.f32.mrb[0].mxu0
        %554 = vmatprep.mubr.f32.mxu0 0.0
        %555 = vmatmul.mubr.f32.gmra.mrb[0].mxu0 %v457
        %v556 = vpop.f32.mrb[0].mxu0
        %v557 = vadd.f32 0.0, %v556
        %v558 = vpop.f32.mrb[0].mxu0
        %559 = vmatprep.mubr.f32.mxu0 0.0
        %560 = vmatmul.mubr.f32.gmra.mrb[0].mxu0 %v460
        %v561 = vpop.f32.mrb[0].mxu0
        %v562 = vadd.f32 0.0, %v561
        %v563 = vpop.f32.mrb[0].mxu0
        %564 = vmatprep.mubr.f32.mxu0 0.0
        %565 = vmatmul.mubr.f32.gmra.mrb[0].mxu0 %v463
        %v566 = vpop.f32.mrb[0].mxu0
        %v567 = vadd.f32 0.0, %v566
        %v568 = vpop.f32.mrb[0].mxu0
        %569 = vmatprep.mubr.f32.mxu0 0.0
        %570 = vmatmul.mubr.f32.gmra.mrb[0].mxu0 %v466
        %v571 = vpop.f32.mrb[0].mxu0
        %v572 = vadd.f32 0.0, %v571
        %v573 = vpop.f32.mrb[0].mxu0
        %574 = vmatprep.mubr.f32.mxu0 0.0
        %575 = vmatmul.mubr.f32.gmra.mrb[0].mxu0 %v469
        %v576 = vpop.f32.mrb[0].mxu0
        %v577 = vadd.f32 0.0, %v576
        %v578 = vpop.f32.mrb[0].mxu0
        %579 = vmatprep.mubr.f32.mxu0 0.0
        %580 = vmatmul.mubr.f32.gmra.mrb[0].mxu0 %v472
        %v581 = vpop.f32.mrb[0].mxu0
        %v582 = vadd.f32 0.0, %v581
        %v583 = vpop.f32.mrb[0].mxu0
        %584 = vdwg.mxu0
        %585 = vxpose.xlu0.b32.start [1/16] %v547, 128
        %586 = vxpose.xlu0.b32.cont [2/16] %v552, 128
        %587 = vxpose.xlu0.b32.cont [3/16] 0.0, 128
        %588 = vxpose.xlu0.b32.cont [4/16] 0.0, 128
        %589 = vxpose.xlu0.b32.cont [5/16] 0.0, 128
        %590 = vxpose.xlu0.b32.cont [6/16] 0.0, 128
        %591 = vxpose.xlu0.b32.cont [7/16] 0.0, 128
        %592 = vxpose.xlu0.b32.cont [8/16] 0.0, 128
        %593 = vxpose.xlu0.b32.cont [9/16] 0.0, 128
        %594 = vxpose.xlu0.b32.cont [10/16] 0.0, 128
        %595 = vxpose.xlu0.b32.cont [11/16] 0.0, 128
        %596 = vxpose.xlu0.b32.cont [12/16] 0.0, 128
        %597 = vxpose.xlu0.b32.cont [13/16] 0.0, 128
        %598 = vxpose.xlu0.b32.cont [14/16] 0.0, 128
        %599 = vxpose.xlu0.b32.cont [15/16] 0.0, 128
        %600 = vxpose.xlu0.b32.end [16/16] 0.0, 128
        %v601 = vpop.trf.xlu0
        %v602 = vpop.trf.xlu0
        %v603 = vpop.trf.xlu0
        %v604 = vpop.trf.xlu0
        %v605 = vpop.trf.xlu0
        %v606 = vpop.trf.xlu0
        %v607 = vpop.trf.xlu0
        %v608 = vpop.trf.xlu0
        %v609 = vpop.trf.xlu0
        %v610 = vpop.trf.xlu0
        %v611 = vpop.trf.xlu0
        %v612 = vpop.trf.xlu0
        %v613 = vpop.trf.xlu0
        %v614 = vpop.trf.xlu0
        %v615 = vpop.trf.xlu0
        %v616 = vpop.trf.xlu0
        %617 = vxpose.xlu0.b32.start [1/16] %v557, 128
        %618 = vxpose.xlu0.b32.cont [2/16] %v562, 128
        %619 = vxpose.xlu0.b32.cont [3/16] 0.0, 128
        %620 = vxpose.xlu0.b32.cont [4/16] 0.0, 128
        %621 = vxpose.xlu0.b32.cont [5/16] 0.0, 128
        %622 = vxpose.xlu0.b32.cont [6/16] 0.0, 128
        %623 = vxpose.xlu0.b32.cont [7/16] 0.0, 128
        %624 = vxpose.xlu0.b32.cont [8/16] 0.0, 128
        %625 = vxpose.xlu0.b32.cont [9/16] 0.0, 128
        %626 = vxpose.xlu0.b32.cont [10/16] 0.0, 128
        %627 = vxpose.xlu0.b32.cont [11/16] 0.0, 128
        %628 = vxpose.xlu0.b32.cont [12/16] 0.0, 128
        %629 = vxpose.xlu0.b32.cont [13/16] 0.0, 128
        %630 = vxpose.xlu0.b32.cont [14/16] 0.0, 128
        %631 = vxpose.xlu0.b32.cont [15/16] 0.0, 128
        %632 = vxpose.xlu0.b32.end [16/16] 0.0, 128
        %v633 = vpop.trf.xlu0
        %v634 = vpop.trf.xlu0
        %v635 = vpop.trf.xlu0
        %v636 = vpop.trf.xlu0
        %v637 = vpop.trf.xlu0
        %v638 = vpop.trf.xlu0
        %v639 = vpop.trf.xlu0
        %v640 = vpop.trf.xlu0
        %v641 = vpop.trf.xlu0
        %v642 = vpop.trf.xlu0
        %v643 = vpop.trf.xlu0
        %v644 = vpop.trf.xlu0
        %v645 = vpop.trf.xlu0
        %v646 = vpop.trf.xlu0
        %v647 = vpop.trf.xlu0
        %v648 = vpop.trf.xlu0
        %649 = vxpose.xlu0.b32.start [1/16] %v567, 128
        %650 = vxpose.xlu0.b32.cont [2/16] %v572, 128
        %651 = vxpose.xlu0.b32.cont [3/16] 0.0, 128
        %652 = vxpose.xlu0.b32.cont [4/16] 0.0, 128
        %653 = vxpose.xlu0.b32.cont [5/16] 0.0, 128
        %654 = vxpose.xlu0.b32.cont [6/16] 0.0, 128
        %655 = vxpose.xlu0.b32.cont [7/16] 0.0, 128
        %656 = vxpose.xlu0.b32.cont [8/16] 0.0, 128
        %657 = vxpose.xlu0.b32.cont [9/16] 0.0, 128
        %658 = vxpose.xlu0.b32.cont [10/16] 0.0, 128
        %659 = vxpose.xlu0.b32.cont [11/16] 0.0, 128
        %660 = vxpose.xlu0.b32.cont [12/16] 0.0, 128
        %661 = vxpose.xlu0.b32.cont [13/16] 0.0, 128
        %662 = vxpose.xlu0.b32.cont [14/16] 0.0, 128
        %663 = vxpose.xlu0.b32.cont [15/16] 0.0, 128
        %664 = vxpose.xlu0.b32.end [16/16] 0.0, 128
        %v665 = vpop.trf.xlu0
        %v666 = vpop.trf.xlu0
        %v667 = vpop.trf.xlu0
        %v668 = vpop.trf.xlu0
        %v669 = vpop.trf.xlu0
        %v670 = vpop.trf.xlu0
        %v671 = vpop.trf.xlu0
        %v672 = vpop.trf.xlu0
        %v673 = vpop.trf.xlu0
        %v674 = vpop.trf.xlu0
        %v675 = vpop.trf.xlu0
        %v676 = vpop.trf.xlu0
        %v677 = vpop.trf.xlu0
        %v678 = vpop.trf.xlu0
        %v679 = vpop.trf.xlu0
        %v680 = vpop.trf.xlu0
        %681 = vxpose.xlu0.b32.start [1/16] %v577, 128
        %682 = vxpose.xlu0.b32.cont [2/16] %v582, 128
        %683 = vxpose.xlu0.b32.cont [3/16] 0.0, 128
        %684 = vxpose.xlu0.b32.cont [4/16] 0.0, 128
        %685 = vxpose.xlu0.b32.cont [5/16] 0.0, 128
        %686 = vxpose.xlu0.b32.cont [6/16] 0.0, 128
        %687 = vxpose.xlu0.b32.cont [7/16] 0.0, 128
        %688 = vxpose.xlu0.b32.cont [8/16] 0.0, 128
        %689 = vxpose.xlu0.b32.cont [9/16] 0.0, 128
        %690 = vxpose.xlu0.b32.cont [10/16] 0.0, 128
        %691 = vxpose.xlu0.b32.cont [11/16] 0.0, 128
        %692 = vxpose.xlu0.b32.cont [12/16] 0.0, 128
        %693 = vxpose.xlu0.b32.cont [13/16] 0.0, 128
        %694 = vxpose.xlu0.b32.cont [14/16] 0.0, 128
        %695 = vxpose.xlu0.b32.cont [15/16] 0.0, 128
        %696 = vxpose.xlu0.b32.end [16/16] 0.0, 128
        %v697 = vpop.trf.xlu0
        %v698 = vpop.trf.xlu0
        %v699 = vpop.trf.xlu0
        %v700 = vpop.trf.xlu0
        %v701 = vpop.trf.xlu0
        %v702 = vpop.trf.xlu0
        %v703 = vpop.trf.xlu0
        %v704 = vpop.trf.xlu0
        %v705 = vpop.trf.xlu0
        %v706 = vpop.trf.xlu0
        %v707 = vpop.trf.xlu0
        %v708 = vpop.trf.xlu0
        %v709 = vpop.trf.xlu0
        %v710 = vpop.trf.xlu0
        %v711 = vpop.trf.xlu0
        %v712 = vpop.trf.xlu0
        %713 = vst.msk [vmem:[%s140] sm:$0xff] %vm192, %v601
        %714 = vst.msk [vmem:[%s140 + $0x8] sm:$0xff] %vm192, %v602
        %715 = vst.msk [vmem:[%s140 + $0x10] sm:$0xff] %vm192, %v633
        %716 = vst.msk [vmem:[%s140 + $0x18] sm:$0xff] %vm192, %v634
        %717 = vst.msk [vmem:[%s140 + $0x20] sm:$0xff] %vm192, %v665
        %718 = vst.msk [vmem:[%s140 + $0x28] sm:$0xff] %vm192, %v666
        %719 = vst.msk [vmem:[%s140 + $0x30] sm:$0xff] %vm192, %v697
        %720 = vst.msk [vmem:[%s140 + $0x38] sm:$0xff] %vm192, %v698
        %s721 = smul.u32 %s23, 4
        %s722 = sadd.s32 %s721, 1
        %s723 = smul.u32 %s722, 2
        %s724 = sld [smem:[#allocation3 + %s723]]
        %s725 = sadd.s32 %s723, 1
        %s726 = sld [smem:[#allocation3 + %s725]]
        %v727 = vstv %s724
        %v728 = vadd.s32 %v151, %v727
        %v729 = vsub.s32 %v728, 4
        %vm730 = vcmp.gt.s32.totalorder %v729, 0
        %v731 = vsel %vm730, %v729, 0
        %vm732 = vcmp.lt.s32.totalorder %v731, 15
        %v733 = vsel %vm732, %v731, 15
        %vm734 = vcmp.eq.s32.totalorder %v148, %v733
        %vm735 = vcmp.eq.s32.totalorder %v149, %v733
        %v736 = vsel %vm734, 1, 0
        %v737 = vsel %vm735, 1, 0
        %v738 = vcvt.s32.f32 %v736
        %v739 = vcvt.s32.f32 %v737
        %v740 = vstv %s726
        %v741 = vadd.s32 %v148, %v740
        %v742 = vadd.s32 %v149, %v740
        %v743 = vsub.s32 %v741, 4
        %v744 = vsub.s32 %v742, 4
        %vm745 = vcmp.gt.s32.totalorder %v743, 0
        %v746 = vsel %vm745, %v743, 0
        %vm747 = vcmp.gt.s32.totalorder %v744, 0
        %v748 = vsel %vm747, %v744, 0
        %vm749 = vcmp.lt.s32.totalorder %v746, 15
        %v750 = vsel %vm749, %v746, 15
        %vm751 = vcmp.lt.s32.totalorder %v748, 15
        %v752 = vsel %vm751, %v748, 15
        %vm753 = vcmp.eq.s32.totalorder %v151, %v750
        %vm754 = vcmp.eq.s32.totalorder %v151, %v752
        %v755 = vsel %vm753, 1, 0
        %v756 = vsel %vm754, 1, 0
        %v757 = vcvt.s32.f32 %v755
        %v758 = vcvt.s32.f32 %v756
        %s759 = scalar_lea.vmem %s122, 64 [#allocation4]
        %v760 = vld [vmem:[%s759] sm:$0xff]
        %v761 = vld [vmem:[%s759 + $0x8] sm:$0xff]
        %v762 = vld [vmem:[%s759 + $0x10] sm:$0xff]
        %v763 = vld [vmem:[%s759 + $0x18] sm:$0xff]
        %v764 = vld [vmem:[%s759 + $0x20] sm:$0xff]
        %v765 = vld [vmem:[%s759 + $0x28] sm:$0xff]
        %v766 = vld [vmem:[%s759 + $0x30] sm:$0xff]
        %v767 = vld [vmem:[%s759 + $0x38] sm:$0xff]
        %v769 = vsel %vm192, %v760, 0
        %v772 = vsel %vm192, %v761, 0
        %v775 = vsel %vm192, %v762, 0
        %v778 = vsel %vm192, %v763, 0
        %v781 = vsel %vm192, %v764, 0
        %v784 = vsel %vm192, %v765, 0
        %v787 = vsel %vm192, %v766, 0
        %v790 = vsel %vm192, %v767, 0
        %792 = vmatprep.subr.mxu0 0.0
        %793 = vmatpush1.msra.mxu0 %v738
        %794 = vmatprep.subr.mxu0 0.0
        %795 = vmatpush1.msra.mxu0 %v739
        %796 = vmatprep.subr.mxu0 0.0
        %797 = vmatpush1.msra.mxu0 0.0
        %798 = vmatprep.subr.mxu0 0.0
        %799 = vmatpush1.msra.mxu0 0.0
        %800 = vmatprep.subr.mxu0 0.0
        %801 = vmatpush1.msra.mxu0 0.0
        %802 = vmatprep.subr.mxu0 0.0
        %803 = vmatpush1.msra.mxu0 0.0
        %804 = vmatprep.subr.mxu0 0.0
        %805 = vmatpush1.msra.mxu0 0.0
        %806 = vmatprep.subr.mxu0 0.0
        %807 = vmatpush1.msra.mxu0 0.0
        %808 = vmatprep.subr.mxu0 0.0
        %809 = vmatpush1.msra.mxu0 0.0
        %810 = vmatprep.subr.mxu0 0.0
        %811 = vmatpush1.msra.mxu0 0.0
        %812 = vmatprep.subr.mxu0 0.0
        %813 = vmatpush1.msra.mxu0 0.0
        %814 = vmatprep.subr.mxu0 0.0
        %815 = vmatpush1.msra.mxu0 0.0
        %816 = vmatprep.subr.mxu0 0.0
        %817 = vmatpush1.msra.mxu0 0.0
        %818 = vmatprep.subr.mxu0 0.0
        %819 = vmatpush1.msra.mxu0 0.0
        %820 = vmatprep.subr.mxu0 0.0
        %821 = vmatpush1.msra.mxu0 0.0
        %822 = vmatprep.subr.mxu0 0.0
        %823 = vmatpush1.msra.mxu0 0.0
        %824 = vmatprep.subr.mxu0 0.0
        %825 = vmatpush1.msra.mxu0 0.0
        %826 = vmatprep.subr.mxu0 0.0
        %827 = vmatpush1.msra.mxu0 0.0
        %828 = vmatprep.subr.mxu0 0.0
        %829 = vmatpush1.msra.mxu0 0.0
        %830 = vmatprep.subr.mxu0 0.0
        %831 = vmatpush1.msra.mxu0 0.0
        %832 = vmatprep.subr.mxu0 0.0
        %833 = vmatpush1.msra.mxu0 0.0
        %834 = vmatprep.subr.mxu0 0.0
        %835 = vmatpush1.msra.mxu0 0.0
        %836 = vmatprep.subr.mxu0 0.0
        %837 = vmatpush1.msra.mxu0 0.0
        %838 = vmatprep.subr.mxu0 0.0
        %839 = vmatpush1.msra.mxu0 0.0
        %840 = vmatprep.subr.mxu0 0.0
        %841 = vmatpush1.msra.mxu0 0.0
        %842 = vmatprep.subr.mxu0 0.0
        %843 = vmatpush1.msra.mxu0 0.0
        %844 = vmatprep.subr.mxu0 0.0
        %845 = vmatpush1.msra.mxu0 0.0
        %846 = vmatprep.subr.mxu0 0.0
        %847 = vmatpush1.msra.mxu0 0.0
        %848 = vmatprep.subr.mxu0 0.0
        %849 = vmatpush1.msra.mxu0 0.0
        %850 = vmatprep.subr.mxu0 0.0
        %851 = vmatpush1.msra.mxu0 0.0
        %852 = vmatprep.subr.mxu0 0.0
        %853 = vmatpush1.msra.mxu0 0.0
        %854 = vmatprep.subr.mxu0 0.0
        %855 = vmatpush1.msra.mxu0 0.0
        %856 = vmatprep.mubr.f32.mxu0 0.0
        %857 = vmatmul.mubr.f32.gmra.mrb[0].mxu0 %v769
        %v858 = vpop.f32.mrb[0].mxu0
        %v859 = vadd.f32 0.0, %v858
        %v860 = vpop.f32.mrb[0].mxu0
        %861 = vmatprep.mubr.f32.mxu0 0.0
        %862 = vmatmul.mubr.f32.gmra.mrb[0].mxu0 %v772
        %v863 = vpop.f32.mrb[0].mxu0
        %v864 = vadd.f32 0.0, %v863
        %v865 = vpop.f32.mrb[0].mxu0
        %866 = vmatprep.mubr.f32.mxu0 0.0
        %867 = vmatmul.mubr.f32.gmra.mrb[0].mxu0 %v775
        %v868 = vpop.f32.mrb[0].mxu0
        %v869 = vadd.f32 0.0, %v868
        %v870 = vpop.f32.mrb[0].mxu0
        %871 = vmatprep.mubr.f32.mxu0 0.0
        %872 = vmatmul.mubr.f32.gmra.mrb[0].mxu0 %v778
        %v873 = vpop.f32.mrb[0].mxu0
        %v874 = vadd.f32 0.0, %v873
        %v875 = vpop.f32.mrb[0].mxu0
        %876 = vmatprep.mubr.f32.mxu0 0.0
        %877 = vmatmul.mubr.f32.gmra.mrb[0].mxu0 %v781
        %v878 = vpop.f32.mrb[0].mxu0
        %v879 = vadd.f32 0.0, %v878
        %v880 = vpop.f32.mrb[0].mxu0
        %881 = vmatprep.mubr.f32.mxu0 0.0
        %882 = vmatmul.mubr.f32.gmra.mrb[0].mxu0 %v784
        %v883 = vpop.f32.mrb[0].mxu0
        %v884 = vadd.f32 0.0, %v883
        %v885 = vpop.f32.mrb[0].mxu0
        %886 = vmatprep.mubr.f32.mxu0 0.0
        %887 = vmatmul.mubr.f32.gmra.mrb[0].mxu0 %v787
        %v888 = vpop.f32.mrb[0].mxu0
        %v889 = vadd.f32 0.0, %v888
        %v890 = vpop.f32.mrb[0].mxu0
        %891 = vmatprep.mubr.f32.mxu0 0.0
        %892 = vmatmul.mubr.f32.gmra.mrb[0].mxu0 %v790
        %v893 = vpop.f32.mrb[0].mxu0
        %v894 = vadd.f32 0.0, %v893
        %v895 = vpop.f32.mrb[0].mxu0
        %896 = vdwg.mxu0
        %897 = vxpose.xlu0.b32.start [1/16] %v859, 128
        %898 = vxpose.xlu0.b32.cont [2/16] %v864, 128
        %899 = vxpose.xlu0.b32.cont [3/16] 0.0, 128
        %900 = vxpose.xlu0.b32.cont [4/16] 0.0, 128
        %901 = vxpose.xlu0.b32.cont [5/16] 0.0, 128
        %902 = vxpose.xlu0.b32.cont [6/16] 0.0, 128
        %903 = vxpose.xlu0.b32.cont [7/16] 0.0, 128
        %904 = vxpose.xlu0.b32.cont [8/16] 0.0, 128
        %905 = vxpose.xlu0.b32.cont [9/16] 0.0, 128
        %906 = vxpose.xlu0.b32.cont [10/16] 0.0, 128
        %907 = vxpose.xlu0.b32.cont [11/16] 0.0, 128
        %908 = vxpose.xlu0.b32.cont [12/16] 0.0, 128
        %909 = vxpose.xlu0.b32.cont [13/16] 0.0, 128
        %910 = vxpose.xlu0.b32.cont [14/16] 0.0, 128
        %911 = vxpose.xlu0.b32.cont [15/16] 0.0, 128
        %912 = vxpose.xlu0.b32.end [16/16] 0.0, 128
        %v913 = vpop.trf.xlu0
        %v914 = vpop.trf.xlu0
        %v915 = vpop.trf.xlu0
        %v916 = vpop.trf.xlu0
        %v917 = vpop.trf.xlu0
        %v918 = vpop.trf.xlu0
        %v919 = vpop.trf.xlu0
        %v920 = vpop.trf.xlu0
        %v921 = vpop.trf.xlu0
        %v922 = vpop.trf.xlu0
        %v923 = vpop.trf.xlu0
        %v924 = vpop.trf.xlu0
        %v925 = vpop.trf.xlu0
        %v926 = vpop.trf.xlu0
        %v927 = vpop.trf.xlu0
        %v928 = vpop.trf.xlu0
        %929 = vxpose.xlu0.b32.start [1/16] %v869, 128
        %930 = vxpose.xlu0.b32.cont [2/16] %v874, 128
        %931 = vxpose.xlu0.b32.cont [3/16] 0.0, 128
        %932 = vxpose.xlu0.b32.cont [4/16] 0.0, 128
        %933 = vxpose.xlu0.b32.cont [5/16] 0.0, 128
        %934 = vxpose.xlu0.b32.cont [6/16] 0.0, 128
        %935 = vxpose.xlu0.b32.cont [7/16] 0.0, 128
        %936 = vxpose.xlu0.b32.cont [8/16] 0.0, 128
        %937 = vxpose.xlu0.b32.cont [9/16] 0.0, 128
        %938 = vxpose.xlu0.b32.cont [10/16] 0.0, 128
        %939 = vxpose.xlu0.b32.cont [11/16] 0.0, 128
        %940 = vxpose.xlu0.b32.cont [12/16] 0.0, 128
        %941 = vxpose.xlu0.b32.cont [13/16] 0.0, 128
        %942 = vxpose.xlu0.b32.cont [14/16] 0.0, 128
        %943 = vxpose.xlu0.b32.cont [15/16] 0.0, 128
        %944 = vxpose.xlu0.b32.end [16/16] 0.0, 128
        %v945 = vpop.trf.xlu0
        %v946 = vpop.trf.xlu0
        %v947 = vpop.trf.xlu0
        %v948 = vpop.trf.xlu0
        %v949 = vpop.trf.xlu0
        %v950 = vpop.trf.xlu0
        %v951 = vpop.trf.xlu0
        %v952 = vpop.trf.xlu0
        %v953 = vpop.trf.xlu0
        %v954 = vpop.trf.xlu0
        %v955 = vpop.trf.xlu0
        %v956 = vpop.trf.xlu0
        %v957 = vpop.trf.xlu0
        %v958 = vpop.trf.xlu0
        %v959 = vpop.trf.xlu0
        %v960 = vpop.trf.xlu0
        %961 = vxpose.xlu0.b32.start [1/16] %v879, 128
        %962 = vxpose.xlu0.b32.cont [2/16] %v884, 128
        %963 = vxpose.xlu0.b32.cont [3/16] 0.0, 128
        %964 = vxpose.xlu0.b32.cont [4/16] 0.0, 128
        %965 = vxpose.xlu0.b32.cont [5/16] 0.0, 128
        %966 = vxpose.xlu0.b32.cont [6/16] 0.0, 128
        %967 = vxpose.xlu0.b32.cont [7/16] 0.0, 128
        %968 = vxpose.xlu0.b32.cont [8/16] 0.0, 128
        %969 = vxpose.xlu0.b32.cont [9/16] 0.0, 128
        %970 = vxpose.xlu0.b32.cont [10/16] 0.0, 128
        %971 = vxpose.xlu0.b32.cont [11/16] 0.0, 128
        %972 = vxpose.xlu0.b32.cont [12/16] 0.0, 128
        %973 = vxpose.xlu0.b32.cont [13/16] 0.0, 128
        %974 = vxpose.xlu0.b32.cont [14/16] 0.0, 128
        %975 = vxpose.xlu0.b32.cont [15/16] 0.0, 128
        %976 = vxpose.xlu0.b32.end [16/16] 0.0, 128
        %v977 = vpop.trf.xlu0
        %v978 = vpop.trf.xlu0
        %v979 = vpop.trf.xlu0
        %v980 = vpop.trf.xlu0
        %v981 = vpop.trf.xlu0
        %v982 = vpop.trf.xlu0
        %v983 = vpop.trf.xlu0
        %v984 = vpop.trf.xlu0
        %v985 = vpop.trf.xlu0
        %v986 = vpop.trf.xlu0
        %v987 = vpop.trf.xlu0
        %v988 = vpop.trf.xlu0
        %v989 = vpop.trf.xlu0
        %v990 = vpop.trf.xlu0
        %v991 = vpop.trf.xlu0
        %v992 = vpop.trf.xlu0
        %993 = vxpose.xlu0.b32.start [1/16] %v889, 128
        %994 = vxpose.xlu0.b32.cont [2/16] %v894, 128
        %995 = vxpose.xlu0.b32.cont [3/16] 0.0, 128
        %996 = vxpose.xlu0.b32.cont [4/16] 0.0, 128
        %997 = vxpose.xlu0.b32.cont [5/16] 0.0, 128
        %998 = vxpose.xlu0.b32.cont [6/16] 0.0, 128
        %999 = vxpose.xlu0.b32.cont [7/16] 0.0, 128
        %1000 = vxpose.xlu0.b32.cont [8/16] 0.0, 128
        %1001 = vxpose.xlu0.b32.cont [9/16] 0.0, 128
        %1002 = vxpose.xlu0.b32.cont [10/16] 0.0, 128
        %1003 = vxpose.xlu0.b32.cont [11/16] 0.0, 128
        %1004 = vxpose.xlu0.b32.cont [12/16] 0.0, 128
        %1005 = vxpose.xlu0.b32.cont [13/16] 0.0, 128
        %1006 = vxpose.xlu0.b32.cont [14/16] 0.0, 128
        %1007 = vxpose.xlu0.b32.cont [15/16] 0.0, 128
        %1008 = vxpose.xlu0.b32.end [16/16] 0.0, 128
        %v1009 = vpop.trf.xlu0
        %v1010 = vpop.trf.xlu0
        %v1011 = vpop.trf.xlu0
        %v1012 = vpop.trf.xlu0
        %v1013 = vpop.trf.xlu0
        %v1014 = vpop.trf.xlu0
        %v1015 = vpop.trf.xlu0
        %v1016 = vpop.trf.xlu0
        %v1017 = vpop.trf.xlu0
        %v1018 = vpop.trf.xlu0
        %v1019 = vpop.trf.xlu0
        %v1020 = vpop.trf.xlu0
        %v1021 = vpop.trf.xlu0
        %v1022 = vpop.trf.xlu0
        %v1023 = vpop.trf.xlu0
        %v1024 = vpop.trf.xlu0
        %v1026 = vsel %vm192, %v913, 0
        %v1029 = vsel %vm192, %v914, 0
        %v1032 = vsel %vm192, %v945, 0
        %v1035 = vsel %vm192, %v946, 0
        %v1038 = vsel %vm192, %v977, 0
        %v1041 = vsel %vm192, %v978, 0
        %v1044 = vsel %vm192, %v1009, 0
        %v1047 = vsel %vm192, %v1010, 0
        %v1050 = vsel %vm192, %v757, 0
        %v1053 = vsel %vm192, %v758, 0
        %1055 = vmatprep.subr.mxu0 0.0
        %1056 = vmatpush1.xpose.msra.mxu0 %v1050
        %1057 = vmatprep.subr.mxu0 0.0
        %1058 = vmatpush1.xpose.msra.mxu0 %v1053
        %1059 = vmatprep.subr.mxu0 0.0
        %1060 = vmatpush1.xpose.msra.mxu0 0.0
        %1061 = vmatprep.subr.mxu0 0.0
        %1062 = vmatpush1.xpose.msra.mxu0 0.0
        %1063 = vmatprep.subr.mxu0 0.0
        %1064 = vmatpush1.xpose.msra.mxu0 0.0
        %1065 = vmatprep.subr.mxu0 0.0
        %1066 = vmatpush1.xpose.msra.mxu0 0.0
        %1067 = vmatprep.subr.mxu0 0.0
        %1068 = vmatpush1.xpose.msra.mxu0 0.0
        %1069 = vmatprep.subr.mxu0 0.0
        %1070 = vmatpush1.xpose.msra.mxu0 0.0
        %1071 = vmatprep.subr.mxu0 0.0
        %1072 = vmatpush1.xpose.msra.mxu0 0.0
        %1073 = vmatprep.subr.mxu0 0.0
        %1074 = vmatpush1.xpose.msra.mxu0 0.0
        %1075 = vmatprep.subr.mxu0 0.0
        %1076 = vmatpush1.xpose.msra.mxu0 0.0
        %1077 = vmatprep.subr.mxu0 0.0
        %1078 = vmatpush1.xpose.msra.mxu0 0.0
        %1079 = vmatprep.subr.mxu0 0.0
        %1080 = vmatpush1.xpose.msra.mxu0 0.0
        %1081 = vmatprep.subr.mxu0 0.0
        %1082 = vmatpush1.xpose.msra.mxu0 0.0
        %1083 = vmatprep.subr.mxu0 0.0
        %1084 = vmatpush1.xpose.msra.mxu0 0.0
        %1085 = vmatprep.subr.mxu0 0.0
        %1086 = vmatpush1.xpose.msra.mxu0 0.0
        %1087 = vmatprep.subr.mxu0 0.0
        %1088 = vmatpush1.xpose.msra.mxu0 0.0
        %1089 = vmatprep.subr.mxu0 0.0
        %1090 = vmatpush1.xpose.msra.mxu0 0.0
        %1091 = vmatprep.subr.mxu0 0.0
        %1092 = vmatpush1.xpose.msra.mxu0 0.0
        %1093 = vmatprep.subr.mxu0 0.0
        %1094 = vmatpush1.xpose.msra.mxu0 0.0
        %1095 = vmatprep.subr.mxu0 0.0
        %1096 = vmatpush1.xpose.msra.mxu0 0.0
        %1097 = vmatprep.subr.mxu0 0.0
        %1098 = vmatpush1.xpose.msra.mxu0 0.0
        %1099 = vmatprep.subr.mxu0 0.0
        %1100 = vmatpush1.xpose.msra.mxu0 0.0
        %1101 = vmatprep.subr.mxu0 0.0
        %1102 = vmatpush1.xpose.msra.mxu0 0.0
        %1103 = vmatprep.subr.mxu0 0.0
        %1104 = vmatpush1.xpose.msra.mxu0 0.0
        %1105 = vmatprep.subr.mxu0 0.0
        %1106 = vmatpush1.xpose.msra.mxu0 0.0
        %1107 = vmatprep.subr.mxu0 0.0
        %1108 = vmatpush1.xpose.msra.mxu0 0.0
        %1109 = vmatprep.subr.mxu0 0.0
        %1110 = vmatpush1.xpose.msra.mxu0 0.0
        %1111 = vmatprep.subr.mxu0 0.0
        %1112 = vmatpush1.xpose.msra.mxu0 0.0
        %1113 = vmatprep.subr.mxu0 0.0
        %1114 = vmatpush1.xpose.msra.mxu0 0.0
        %1115 = vmatprep.subr.mxu0 0.0
        %1116 = vmatpush1.xpose.msra.mxu0 0.0
        %1117 = vmatprep.subr.mxu0 0.0
        %1118 = vmatpush1.xpose.msra.mxu0 0.0
        %1119 = vmatprep.mubr.f32.mxu0 0.0
        %1120 = vmatmul.mubr.f32.gmra.mrb[0].mxu0 %v1026
        %v1121 = vpop.f32.mrb[0].mxu0
        %v1122 = vadd.f32 0.0, %v1121
        %v1123 = vpop.f32.mrb[0].mxu0
        %1124 = vmatprep.mubr.f32.mxu0 0.0
        %1125 = vmatmul.mubr.f32.gmra.mrb[0].mxu0 %v1029
        %v1126 = vpop.f32.mrb[0].mxu0
        %v1127 = vadd.f32 0.0, %v1126
        %v1128 = vpop.f32.mrb[0].mxu0
        %1129 = vmatprep.mubr.f32.mxu0 0.0
        %1130 = vmatmul.mubr.f32.gmra.mrb[0].mxu0 %v1032
        %v1131 = vpop.f32.mrb[0].mxu0
        %v1132 = vadd.f32 0.0, %v1131
        %v1133 = vpop.f32.mrb[0].mxu0
        %1134 = vmatprep.mubr.f32.mxu0 0.0
        %1135 = vmatmul.mubr.f32.gmra.mrb[0].mxu0 %v1035
        %v1136 = vpop.f32.mrb[0].mxu0
        %v1137 = vadd.f32 0.0, %v1136
        %v1138 = vpop.f32.mrb[0].mxu0
        %1139 = vmatprep.mubr.f32.mxu0 0.0
        %1140 = vmatmul.mubr.f32.gmra.mrb[0].mxu0 %v1038
        %v1141 = vpop.f32.mrb[0].mxu0
        %v1142 = vadd.f32 0.0, %v1141
        %v1143 = vpop.f32.mrb[0].mxu0
        %1144 = vmatprep.mubr.f32.mxu0 0.0
        %1145 = vmatmul.mubr.f32.gmra.mrb[0].mxu0 %v1041
        %v1146 = vpop.f32.mrb[0].mxu0
        %v1147 = vadd.f32 0.0, %v1146
        %v1148 = vpop.f32.mrb[0].mxu0
        %1149 = vmatprep.mubr.f32.mxu0 0.0
        %1150 = vmatmul.mubr.f32.gmra.mrb[0].mxu0 %v1044
        %v1151 = vpop.f32.mrb[0].mxu0
        %v1152 = vadd.f32 0.0, %v1151
        %v1153 = vpop.f32.mrb[0].mxu0
        %1154 = vmatprep.mubr.f32.mxu0 0.0
        %1155 = vmatmul.mubr.f32.gmra.mrb[0].mxu0 %v1047
        %v1156 = vpop.f32.mrb[0].mxu0
        %v1157 = vadd.f32 0.0, %v1156
        %v1158 = vpop.f32.mrb[0].mxu0
        %1159 = vdwg.mxu0
        %1160 = vxpose.xlu0.b32.start [1/16] %v1122, 128
        %1161 = vxpose.xlu0.b32.cont [2/16] %v1127, 128
        %1162 = vxpose.xlu0.b32.cont [3/16] 0.0, 128
        %1163 = vxpose.xlu0.b32.cont [4/16] 0.0, 128
        %1164 = vxpose.xlu0.b32.cont [5/16] 0.0, 128
        %1165 = vxpose.xlu0.b32.cont [6/16] 0.0, 128
        %1166 = vxpose.xlu0.b32.cont [7/16] 0.0, 128
        %1167 = vxpose.xlu0.b32.cont [8/16] 0.0, 128
        %1168 = vxpose.xlu0.b32.cont [9/16] 0.0, 128
        %1169 = vxpose.xlu0.b32.cont [10/16] 0.0, 128
        %1170 = vxpose.xlu0.b32.cont [11/16] 0.0, 128
        %1171 = vxpose.xlu0.b32.cont [12/16] 0.0, 128
        %1172 = vxpose.xlu0.b32.cont [13/16] 0.0, 128
        %1173 = vxpose.xlu0.b32.cont [14/16] 0.0, 128
        %1174 = vxpose.xlu0.b32.cont [15/16] 0.0, 128
        %1175 = vxpose.xlu0.b32.end [16/16] 0.0, 128
        %v1176 = vpop.trf.xlu0
        %v1177 = vpop.trf.xlu0
        %v1178 = vpop.trf.xlu0
        %v1179 = vpop.trf.xlu0
        %v1180 = vpop.trf.xlu0
        %v1181 = vpop.trf.xlu0
        %v1182 = vpop.trf.xlu0
        %v1183 = vpop.trf.xlu0
        %v1184 = vpop.trf.xlu0
        %v1185 = vpop.trf.xlu0
        %v1186 = vpop.trf.xlu0
        %v1187 = vpop.trf.xlu0
        %v1188 = vpop.trf.xlu0
        %v1189 = vpop.trf.xlu0
        %v1190 = vpop.trf.xlu0
        %v1191 = vpop.trf.xlu0
        %1192 = vxpose.xlu0.b32.start [1/16] %v1132, 128
        %1193 = vxpose.xlu0.b32.cont [2/16] %v1137, 128
        %1194 = vxpose.xlu0.b32.cont [3/16] 0.0, 128
        %1195 = vxpose.xlu0.b32.cont [4/16] 0.0, 128
        %1196 = vxpose.xlu0.b32.cont [5/16] 0.0, 128
        %1197 = vxpose.xlu0.b32.cont [6/16] 0.0, 128
        %1198 = vxpose.xlu0.b32.cont [7/16] 0.0, 128
        %1199 = vxpose.xlu0.b32.cont [8/16] 0.0, 128
        %1200 = vxpose.xlu0.b32.cont [9/16] 0.0, 128
        %1201 = vxpose.xlu0.b32.cont [10/16] 0.0, 128
        %1202 = vxpose.xlu0.b32.cont [11/16] 0.0, 128
        %1203 = vxpose.xlu0.b32.cont [12/16] 0.0, 128
        %1204 = vxpose.xlu0.b32.cont [13/16] 0.0, 128
        %1205 = vxpose.xlu0.b32.cont [14/16] 0.0, 128
        %1206 = vxpose.xlu0.b32.cont [15/16] 0.0, 128
        %1207 = vxpose.xlu0.b32.end [16/16] 0.0, 128
        %v1208 = vpop.trf.xlu0
        %v1209 = vpop.trf.xlu0
        %v1210 = vpop.trf.xlu0
        %v1211 = vpop.trf.xlu0
        %v1212 = vpop.trf.xlu0
        %v1213 = vpop.trf.xlu0
        %v1214 = vpop.trf.xlu0
        %v1215 = vpop.trf.xlu0
        %v1216 = vpop.trf.xlu0
        %v1217 = vpop.trf.xlu0
        %v1218 = vpop.trf.xlu0
        %v1219 = vpop.trf.xlu0
        %v1220 = vpop.trf.xlu0
        %v1221 = vpop.trf.xlu0
        %v1222 = vpop.trf.xlu0
        %v1223 = vpop.trf.xlu0
        %1224 = vxpose.xlu0.b32.start [1/16] %v1142, 128
        %1225 = vxpose.xlu0.b32.cont [2/16] %v1147, 128
        %1226 = vxpose.xlu0.b32.cont [3/16] 0.0, 128
        %1227 = vxpose.xlu0.b32.cont [4/16] 0.0, 128
        %1228 = vxpose.xlu0.b32.cont [5/16] 0.0, 128
        %1229 = vxpose.xlu0.b32.cont [6/16] 0.0, 128
        %1230 = vxpose.xlu0.b32.cont [7/16] 0.0, 128
        %1231 = vxpose.xlu0.b32.cont [8/16] 0.0, 128
        %1232 = vxpose.xlu0.b32.cont [9/16] 0.0, 128
        %1233 = vxpose.xlu0.b32.cont [10/16] 0.0, 128
        %1234 = vxpose.xlu0.b32.cont [11/16] 0.0, 128
        %1235 = vxpose.xlu0.b32.cont [12/16] 0.0, 128
        %1236 = vxpose.xlu0.b32.cont [13/16] 0.0, 128
        %1237 = vxpose.xlu0.b32.cont [14/16] 0.0, 128
        %1238 = vxpose.xlu0.b32.cont [15/16] 0.0, 128
        %1239 = vxpose.xlu0.b32.end [16/16] 0.0, 128
        %v1240 = vpop.trf.xlu0
        %v1241 = vpop.trf.xlu0
        %v1242 = vpop.trf.xlu0
        %v1243 = vpop.trf.xlu0
        %v1244 = vpop.trf.xlu0
        %v1245 = vpop.trf.xlu0
        %v1246 = vpop.trf.xlu0
        %v1247 = vpop.trf.xlu0
        %v1248 = vpop.trf.xlu0
        %v1249 = vpop.trf.xlu0
        %v1250 = vpop.trf.xlu0
        %v1251 = vpop.trf.xlu0
        %v1252 = vpop.trf.xlu0
        %v1253 = vpop.trf.xlu0
        %v1254 = vpop.trf.xlu0
        %v1255 = vpop.trf.xlu0
        %1256 = vxpose.xlu0.b32.start [1/16] %v1152, 128
        %1257 = vxpose.xlu0.b32.cont [2/16] %v1157, 128
        %1258 = vxpose.xlu0.b32.cont [3/16] 0.0, 128
        %1259 = vxpose.xlu0.b32.cont [4/16] 0.0, 128
        %1260 = vxpose.xlu0.b32.cont [5/16] 0.0, 128
        %1261 = vxpose.xlu0.b32.cont [6/16] 0.0, 128
        %1262 = vxpose.xlu0.b32.cont [7/16] 0.0, 128
        %1263 = vxpose.xlu0.b32.cont [8/16] 0.0, 128
        %1264 = vxpose.xlu0.b32.cont [9/16] 0.0, 128
        %1265 = vxpose.xlu0.b32.cont [10/16] 0.0, 128
        %1266 = vxpose.xlu0.b32.cont [11/16] 0.0, 128
        %1267 = vxpose.xlu0.b32.cont [12/16] 0.0, 128
        %1268 = vxpose.xlu0.b32.cont [13/16] 0.0, 128
        %1269 = vxpose.xlu0.b32.cont [14/16] 0.0, 128
        %1270 = vxpose.xlu0.b32.cont [15/16] 0.0, 128
        %1271 = vxpose.xlu0.b32.end [16/16] 0.0, 128
        %v1272 = vpop.trf.xlu0
        %v1273 = vpop.trf.xlu0
        %v1274 = vpop.trf.xlu0
        %v1275 = vpop.trf.xlu0
        %v1276 = vpop.trf.xlu0
        %v1277 = vpop.trf.xlu0
        %v1278 = vpop.trf.xlu0
        %v1279 = vpop.trf.xlu0
        %v1280 = vpop.trf.xlu0
        %v1281 = vpop.trf.xlu0
        %v1282 = vpop.trf.xlu0
        %v1283 = vpop.trf.xlu0
        %v1284 = vpop.trf.xlu0
        %v1285 = vpop.trf.xlu0
        %v1286 = vpop.trf.xlu0
        %v1287 = vpop.trf.xlu0
        %s1288 = scalar_lea.vmem %s140, 64 [#allocation7]
        %1289 = vst.msk [vmem:[%s1288] sm:$0xff] %vm192, %v1176
        %1290 = vst.msk [vmem:[%s1288 + $0x8] sm:$0xff] %vm192, %v1177
        %1291 = vst.msk [vmem:[%s1288 + $0x10] sm:$0xff] %vm192, %v1208
        %1292 = vst.msk [vmem:[%s1288 + $0x18] sm:$0xff] %vm192, %v1209
        %1293 = vst.msk [vmem:[%s1288 + $0x20] sm:$0xff] %vm192, %v1240
        %1294 = vst.msk [vmem:[%s1288 + $0x28] sm:$0xff] %vm192, %v1241
        %1295 = vst.msk [vmem:[%s1288 + $0x30] sm:$0xff] %vm192, %v1272
        %1296 = vst.msk [vmem:[%s1288 + $0x38] sm:$0xff] %vm192, %v1273
        %s1297 = sadd.s32 %s721, 2
        %s1298 = smul.u32 %s1297, 2
        %s1299 = sld [smem:[#allocation3 + %s1298]]
        %s1300 = sadd.s32 %s1298, 1
        %s1301 = sld [smem:[#allocation3 + %s1300]]
        %v1302 = vstv %s1299
        %v1303 = vadd.s32 %v151, %v1302
        %v1304 = vsub.s32 %v1303, 4
        %vm1305 = vcmp.gt.s32.totalorder %v1304, 0
        %v1306 = vsel %vm1305, %v1304, 0
        %vm1307 = vcmp.lt.s32.totalorder %v1306, 15
        %v1308 = vsel %vm1307, %v1306, 15
        %vm1309 = vcmp.eq.s32.totalorder %v148, %v1308
        %vm1310 = vcmp.eq.s32.totalorder %v149, %v1308
        %v1311 = vsel %vm1309, 1, 0
        %v1312 = vsel %vm1310, 1, 0
        %v1313 = vcvt.s32.f32 %v1311
        %v1314 = vcvt.s32.f32 %v1312
        %v1315 = vstv %s1301
        %v1316 = vadd.s32 %v148, %v1315
        %v1317 = vadd.s32 %v149, %v1315
        %v1318 = vsub.s32 %v1316, 4
        %v1319 = vsub.s32 %v1317, 4
        %vm1320 = vcmp.gt.s32.totalorder %v1318, 0
        %v1321 = vsel %vm1320, %v1318, 0
        %vm1322 = vcmp.gt.s32.totalorder %v1319, 0
        %v1323 = vsel %vm1322, %v1319, 0
        %vm1324 = vcmp.lt.s32.totalorder %v1321, 15
        %v1325 = vsel %vm1324, %v1321, 15
        %vm1326 = vcmp.lt.s32.totalorder %v1323, 15
        %v1327 = vsel %vm1326, %v1323, 15
        %vm1328 = vcmp.eq.s32.totalorder %v151, %v1325
        %vm1329 = vcmp.eq.s32.totalorder %v151, %v1327
        %v1330 = vsel %vm1328, 1, 0
        %v1331 = vsel %vm1329, 1, 0
        %v1332 = vcvt.s32.f32 %v1330
        %v1333 = vcvt.s32.f32 %v1331
        %s1334 = scalar_lea.vmem %s122, 128 [#allocation4]
        %v1335 = vld [vmem:[%s1334] sm:$0xff]
        %v1336 = vld [vmem:[%s1334 + $0x8] sm:$0xff]
        %v1337 = vld [vmem:[%s1334 + $0x10] sm:$0xff]
        %v1338 = vld [vmem:[%s1334 + $0x18] sm:$0xff]
        %v1339 = vld [vmem:[%s1334 + $0x20] sm:$0xff]
        %v1340 = vld [vmem:[%s1334 + $0x28] sm:$0xff]
        %v1341 = vld [vmem:[%s1334 + $0x30] sm:$0xff]
        %v1342 = vld [vmem:[%s1334 + $0x38] sm:$0xff]
        %v1344 = vsel %vm192, %v1335, 0
        %v1347 = vsel %vm192, %v1336, 0
        %v1350 = vsel %vm192, %v1337, 0
        %v1353 = vsel %vm192, %v1338, 0
        %v1356 = vsel %vm192, %v1339, 0
        %v1359 = vsel %vm192, %v1340, 0
        %v1362 = vsel %vm192, %v1341, 0
        %v1365 = vsel %vm192, %v1342, 0
        %1367 = vmatprep.subr.mxu0 0.0
        %1368 = vmatpush1.msra.mxu0 %v1313
        %1369 = vmatprep.subr.mxu0 0.0
        %1370 = vmatpush1.msra.mxu0 %v1314
        %1371 = vmatprep.subr.mxu0 0.0
        %1372 = vmatpush1.msra.mxu0 0.0
        %1373 = vmatprep.subr.mxu0 0.0
        %1374 = vmatpush1.msra.mxu0 0.0
        %1375 = vmatprep.subr.mxu0 0.0
        %1376 = vmatpush1.msra.mxu0 0.0
        %1377 = vmatprep.subr.mxu0 0.0
        %1378 = vmatpush1.msra.mxu0 0.0
        %1379 = vmatprep.subr.mxu0 0.0
        %1380 = vmatpush1.msra.mxu0 0.0
        %1381 = vmatprep.subr.mxu0 0.0
        %1382 = vmatpush1.msra.mxu0 0.0
        %1383 = vmatprep.subr.mxu0 0.0
        %1384 = vmatpush1.msra.mxu0 0.0
        %1385 = vmatprep.subr.mxu0 0.0
        %1386 = vmatpush1.msra.mxu0 0.0
        %1387 = vmatprep.subr.mxu0 0.0
        %1388 = vmatpush1.msra.mxu0 0.0
        %1389 = vmatprep.subr.mxu0 0.0
        %1390 = vmatpush1.msra.mxu0 0.0
        %1391 = vmatprep.subr.mxu0 0.0
        %1392 = vmatpush1.msra.mxu0 0.0
        %1393 = vmatprep.subr.mxu0 0.0
        %1394 = vmatpush1.msra.mxu0 0.0
        %1395 = vmatprep.subr.mxu0 0.0
        %1396 = vmatpush1.msra.mxu0 0.0
        %1397 = vmatprep.subr.mxu0 0.0
        %1398 = vmatpush1.msra.mxu0 0.0
        %1399 = vmatprep.subr.mxu0 0.0
        %1400 = vmatpush1.msra.mxu0 0.0
        %1401 = vmatprep.subr.mxu0 0.0
        %1402 = vmatpush1.msra.mxu0 0.0
        %1403 = vmatprep.subr.mxu0 0.0
        %1404 = vmatpush1.msra.mxu0 0.0
        %1405 = vmatprep.subr.mxu0 0.0
        %1406 = vmatpush1.msra.mxu0 0.0
        %1407 = vmatprep.subr.mxu0 0.0
        %1408 = vmatpush1.msra.mxu0 0.0
        %1409 = vmatprep.subr.mxu0 0.0
        %1410 = vmatpush1.msra.mxu0 0.0
        %1411 = vmatprep.subr.mxu0 0.0
        %1412 = vmatpush1.msra.mxu0 0.0
        %1413 = vmatprep.subr.mxu0 0.0
        %1414 = vmatpush1.msra.mxu0 0.0
        %1415 = vmatprep.subr.mxu0 0.0
        %1416 = vmatpush1.msra.mxu0 0.0
        %1417 = vmatprep.subr.mxu0 0.0
        %1418 = vmatpush1.msra.mxu0 0.0
        %1419 = vmatprep.subr.mxu0 0.0
        %1420 = vmatpush1.msra.mxu0 0.0
        %1421 = vmatprep.subr.mxu0 0.0
        %1422 = vmatpush1.msra.mxu0 0.0
        %1423 = vmatprep.subr.mxu0 0.0
        %1424 = vmatpush1.msra.mxu0 0.0
        %1425 = vmatprep.subr.mxu0 0.0
        %1426 = vmatpush1.msra.mxu0 0.0
        %1427 = vmatprep.subr.mxu0 0.0
        %1428 = vmatpush1.msra.mxu0 0.0
        %1429 = vmatprep.subr.mxu0 0.0
        %1430 = vmatpush1.msra.mxu0 0.0
        %1431 = vmatprep.mubr.f32.mxu0 0.0
        %1432 = vmatmul.mubr.f32.gmra.mrb[0].mxu0 %v1344
        %v1433 = vpop.f32.mrb[0].mxu0
        %v1434 = vadd.f32 0.0, %v1433
        %v1435 = vpop.f32.mrb[0].mxu0
        %1436 = vmatprep.mubr.f32.mxu0 0.0
        %1437 = vmatmul.mubr.f32.gmra.mrb[0].mxu0 %v1347
        %v1438 = vpop.f32.mrb[0].mxu0
        %v1439 = vadd.f32 0.0, %v1438
        %v1440 = vpop.f32.mrb[0].mxu0
        %1441 = vmatprep.mubr.f32.mxu0 0.0
        %1442 = vmatmul.mubr.f32.gmra.mrb[0].mxu0 %v1350
        %v1443 = vpop.f32.mrb[0].mxu0
        %v1444 = vadd.f32 0.0, %v1443
        %v1445 = vpop.f32.mrb[0].mxu0
        %1446 = vmatprep.mubr.f32.mxu0 0.0
        %1447 = vmatmul.mubr.f32.gmra.mrb[0].mxu0 %v1353
        %v1448 = vpop.f32.mrb[0].mxu0
        %v1449 = vadd.f32 0.0, %v1448
        %v1450 = vpop.f32.mrb[0].mxu0
        %1451 = vmatprep.mubr.f32.mxu0 0.0
        %1452 = vmatmul.mubr.f32.gmra.mrb[0].mxu0 %v1356
        %v1453 = vpop.f32.mrb[0].mxu0
        %v1454 = vadd.f32 0.0, %v1453
        %v1455 = vpop.f32.mrb[0].mxu0
        %1456 = vmatprep.mubr.f32.mxu0 0.0
        %1457 = vmatmul.mubr.f32.gmra.mrb[0].mxu0 %v1359
        %v1458 = vpop.f32.mrb[0].mxu0
        %v1459 = vadd.f32 0.0, %v1458
        %v1460 = vpop.f32.mrb[0].mxu0
        %1461 = vmatprep.mubr.f32.mxu0 0.0
        %1462 = vmatmul.mubr.f32.gmra.mrb[0].mxu0 %v1362
        %v1463 = vpop.f32.mrb[0].mxu0
        %v1464 = vadd.f32 0.0, %v1463
        %v1465 = vpop.f32.mrb[0].mxu0
        %1466 = vmatprep.mubr.f32.mxu0 0.0
        %1467 = vmatmul.mubr.f32.gmra.mrb[0].mxu0 %v1365
        %v1468 = vpop.f32.mrb[0].mxu0
        %v1469 = vadd.f32 0.0, %v1468
        %v1470 = vpop.f32.mrb[0].mxu0
        %1471 = vdwg.mxu0
        %1472 = vxpose.xlu0.b32.start [1/16] %v1434, 128
        %1473 = vxpose.xlu0.b32.cont [2/16] %v1439, 128
        %1474 = vxpose.xlu0.b32.cont [3/16] 0.0, 128
        %1475 = vxpose.xlu0.b32.cont [4/16] 0.0, 128
        %1476 = vxpose.xlu0.b32.cont [5/16] 0.0, 128
        %1477 = vxpose.xlu0.b32.cont [6/16] 0.0, 128
        %1478 = vxpose.xlu0.b32.cont [7/16] 0.0, 128
        %1479 = vxpose.xlu0.b32.cont [8/16] 0.0, 128
        %1480 = vxpose.xlu0.b32.cont [9/16] 0.0, 128
        %1481 = vxpose.xlu0.b32.cont [10/16] 0.0, 128
        %1482 = vxpose.xlu0.b32.cont [11/16] 0.0, 128
        %1483 = vxpose.xlu0.b32.cont [12/16] 0.0, 128
        %1484 = vxpose.xlu0.b32.cont [13/16] 0.0, 128
        %1485 = vxpose.xlu0.b32.cont [14/16] 0.0, 128
        %1486 = vxpose.xlu0.b32.cont [15/16] 0.0, 128
        %1487 = vxpose.xlu0.b32.end [16/16] 0.0, 128
        %v1488 = vpop.trf.xlu0
        %v1489 = vpop.trf.xlu0
        %v1490 = vpop.trf.xlu0
        %v1491 = vpop.trf.xlu0
        %v1492 = vpop.trf.xlu0
        %v1493 = vpop.trf.xlu0
        %v1494 = vpop.trf.xlu0
        %v1495 = vpop.trf.xlu0
        %v1496 = vpop.trf.xlu0
        %v1497 = vpop.trf.xlu0
        %v1498 = vpop.trf.xlu0
        %v1499 = vpop.trf.xlu0
        %v1500 = vpop.trf.xlu0
        %v1501 = vpop.trf.xlu0
        %v1502 = vpop.trf.xlu0
        %v1503 = vpop.trf.xlu0
        %1504 = vxpose.xlu0.b32.start [1/16] %v1444, 128
        %1505 = vxpose.xlu0.b32.cont [2/16] %v1449, 128
        %1506 = vxpose.xlu0.b32.cont [3/16] 0.0, 128
        %1507 = vxpose.xlu0.b32.cont [4/16] 0.0, 128
        %1508 = vxpose.xlu0.b32.cont [5/16] 0.0, 128
        %1509 = vxpose.xlu0.b32.cont [6/16] 0.0, 128
        %1510 = vxpose.xlu0.b32.cont [7/16] 0.0, 128
        %1511 = vxpose.xlu0.b32.cont [8/16] 0.0, 128
        %1512 = vxpose.xlu0.b32.cont [9/16] 0.0, 128
        %1513 = vxpose.xlu0.b32.cont [10/16] 0.0, 128
        %1514 = vxpose.xlu0.b32.cont [11/16] 0.0, 128
        %1515 = vxpose.xlu0.b32.cont [12/16] 0.0, 128
        %1516 = vxpose.xlu0.b32.cont [13/16] 0.0, 128
        %1517 = vxpose.xlu0.b32.cont [14/16] 0.0, 128
        %1518 = vxpose.xlu0.b32.cont [15/16] 0.0, 128
        %1519 = vxpose.xlu0.b32.end [16/16] 0.0, 128
        %v1520 = vpop.trf.xlu0
        %v1521 = vpop.trf.xlu0
        %v1522 = vpop.trf.xlu0
        %v1523 = vpop.trf.xlu0
        %v1524 = vpop.trf.xlu0
        %v1525 = vpop.trf.xlu0
        %v1526 = vpop.trf.xlu0
        %v1527 = vpop.trf.xlu0
        %v1528 = vpop.trf.xlu0
        %v1529 = vpop.trf.xlu0
        %v1530 = vpop.trf.xlu0
        %v1531 = vpop.trf.xlu0
        %v1532 = vpop.trf.xlu0
        %v1533 = vpop.trf.xlu0
        %v1534 = vpop.trf.xlu0
        %v1535 = vpop.trf.xlu0
        %1536 = vxpose.xlu0.b32.start [1/16] %v1454, 128
        %1537 = vxpose.xlu0.b32.cont [2/16] %v1459, 128
        %1538 = vxpose.xlu0.b32.cont [3/16] 0.0, 128
        %1539 = vxpose.xlu0.b32.cont [4/16] 0.0, 128
        %1540 = vxpose.xlu0.b32.cont [5/16] 0.0, 128
        %1541 = vxpose.xlu0.b32.cont [6/16] 0.0, 128
        %1542 = vxpose.xlu0.b32.cont [7/16] 0.0, 128
        %1543 = vxpose.xlu0.b32.cont [8/16] 0.0, 128
        %1544 = vxpose.xlu0.b32.cont [9/16] 0.0, 128
        %1545 = vxpose.xlu0.b32.cont [10/16] 0.0, 128
        %1546 = vxpose.xlu0.b32.cont [11/16] 0.0, 128
        %1547 = vxpose.xlu0.b32.cont [12/16] 0.0, 128
        %1548 = vxpose.xlu0.b32.cont [13/16] 0.0, 128
        %1549 = vxpose.xlu0.b32.cont [14/16] 0.0, 128
        %1550 = vxpose.xlu0.b32.cont [15/16] 0.0, 128
        %1551 = vxpose.xlu0.b32.end [16/16] 0.0, 128
        %v1552 = vpop.trf.xlu0
        %v1553 = vpop.trf.xlu0
        %v1554 = vpop.trf.xlu0
        %v1555 = vpop.trf.xlu0
        %v1556 = vpop.trf.xlu0
        %v1557 = vpop.trf.xlu0
        %v1558 = vpop.trf.xlu0
        %v1559 = vpop.trf.xlu0
        %v1560 = vpop.trf.xlu0
        %v1561 = vpop.trf.xlu0
        %v1562 = vpop.trf.xlu0
        %v1563 = vpop.trf.xlu0
        %v1564 = vpop.trf.xlu0
        %v1565 = vpop.trf.xlu0
        %v1566 = vpop.trf.xlu0
        %v1567 = vpop.trf.xlu0
        %1568 = vxpose.xlu0.b32.start [1/16] %v1464, 128
        %1569 = vxpose.xlu0.b32.cont [2/16] %v1469, 128
        %1570 = vxpose.xlu0.b32.cont [3/16] 0.0, 128
        %1571 = vxpose.xlu0.b32.cont [4/16] 0.0, 128
        %1572 = vxpose.xlu0.b32.cont [5/16] 0.0, 128
        %1573 = vxpose.xlu0.b32.cont [6/16] 0.0, 128
        %1574 = vxpose.xlu0.b32.cont [7/16] 0.0, 128
        %1575 = vxpose.xlu0.b32.cont [8/16] 0.0, 128
        %1576 = vxpose.xlu0.b32.cont [9/16] 0.0, 128
        %1577 = vxpose.xlu0.b32.cont [10/16] 0.0, 128
        %1578 = vxpose.xlu0.b32.cont [11/16] 0.0, 128
        %1579 = vxpose.xlu0.b32.cont [12/16] 0.0, 128
        %1580 = vxpose.xlu0.b32.cont [13/16] 0.0, 128
        %1581 = vxpose.xlu0.b32.cont [14/16] 0.0, 128
        %1582 = vxpose.xlu0.b32.cont [15/16] 0.0, 128
        %1583 = vxpose.xlu0.b32.end [16/16] 0.0, 128
        %v1584 = vpop.trf.xlu0
        %v1585 = vpop.trf.xlu0
        %v1586 = vpop.trf.xlu0
        %v1587 = vpop.trf.xlu0
        %v1588 = vpop.trf.xlu0
        %v1589 = vpop.trf.xlu0
        %v1590 = vpop.trf.xlu0
        %v1591 = vpop.trf.xlu0
        %v1592 = vpop.trf.xlu0
        %v1593 = vpop.trf.xlu0
        %v1594 = vpop.trf.xlu0
        %v1595 = vpop.trf.xlu0
        %v1596 = vpop.trf.xlu0
        %v1597 = vpop.trf.xlu0
        %v1598 = vpop.trf.xlu0
        %v1599 = vpop.trf.xlu0
        %v1601 = vsel %vm192, %v1488, 0
        %v1604 = vsel %vm192, %v1489, 0
        %v1607 = vsel %vm192, %v1520, 0
        %v1610 = vsel %vm192, %v1521, 0
        %v1613 = vsel %vm192, %v1552, 0
        %v1616 = vsel %vm192, %v1553, 0
        %v1619 = vsel %vm192, %v1584, 0
        %v1622 = vsel %vm192, %v1585, 0
        %v1625 = vsel %vm192, %v1332, 0
        %v1628 = vsel %vm192, %v1333, 0
        %1630 = vmatprep.subr.mxu0 0.0
        %1631 = vmatpush1.xpose.msra.mxu0 %v1625
        %1632 = vmatprep.subr.mxu0 0.0
        %1633 = vmatpush1.xpose.msra.mxu0 %v1628
        %1634 = vmatprep.subr.mxu0 0.0
        %1635 = vmatpush1.xpose.msra.mxu0 0.0
        %1636 = vmatprep.subr.mxu0 0.0
        %1637 = vmatpush1.xpose.msra.mxu0 0.0
        %1638 = vmatprep.subr.mxu0 0.0
        %1639 = vmatpush1.xpose.msra.mxu0 0.0
        %1640 = vmatprep.subr.mxu0 0.0
        %1641 = vmatpush1.xpose.msra.mxu0 0.0
        %1642 = vmatprep.subr.mxu0 0.0
        %1643 = vmatpush1.xpose.msra.mxu0 0.0
        %1644 = vmatprep.subr.mxu0 0.0
        %1645 = vmatpush1.xpose.msra.mxu0 0.0
        %1646 = vmatprep.subr.mxu0 0.0
        %1647 = vmatpush1.xpose.msra.mxu0 0.0
        %1648 = vmatprep.subr.mxu0 0.0
        %1649 = vmatpush1.xpose.msra.mxu0 0.0
        %1650 = vmatprep.subr.mxu0 0.0
        %1651 = vmatpush1.xpose.msra.mxu0 0.0
        %1652 = vmatprep.subr.mxu0 0.0
        %1653 = vmatpush1.xpose.msra.mxu0 0.0
        %1654 = vmatprep.subr.mxu0 0.0
        %1655 = vmatpush1.xpose.msra.mxu0 0.0
        %1656 = vmatprep.subr.mxu0 0.0
        %1657 = vmatpush1.xpose.msra.mxu0 0.0
        %1658 = vmatprep.subr.mxu0 0.0
        %1659 = vmatpush1.xpose.msra.mxu0 0.0
        %1660 = vmatprep.subr.mxu0 0.0
        %1661 = vmatpush1.xpose.msra.mxu0 0.0
        %1662 = vmatprep.subr.mxu0 0.0
        %1663 = vmatpush1.xpose.msra.mxu0 0.0
        %1664 = vmatprep.subr.mxu0 0.0
        %1665 = vmatpush1.xpose.msra.mxu0 0.0
        %1666 = vmatprep.subr.mxu0 0.0
        %1667 = vmatpush1.xpose.msra.mxu0 0.0
        %1668 = vmatprep.subr.mxu0 0.0
        %1669 = vmatpush1.xpose.msra.mxu0 0.0
        %1670 = vmatprep.subr.mxu0 0.0
        %1671 = vmatpush1.xpose.msra.mxu0 0.0
        %1672 = vmatprep.subr.mxu0 0.0
        %1673 = vmatpush1.xpose.msra.mxu0 0.0
        %1674 = vmatprep.subr.mxu0 0.0
        %1675 = vmatpush1.xpose.msra.mxu0 0.0
        %1676 = vmatprep.subr.mxu0 0.0
        %1677 = vmatpush1.xpose.msra.mxu0 0.0
        %1678 = vmatprep.subr.mxu0 0.0
        %1679 = vmatpush1.xpose.msra.mxu0 0.0
        %1680 = vmatprep.subr.mxu0 0.0
        %1681 = vmatpush1.xpose.msra.mxu0 0.0
        %1682 = vmatprep.subr.mxu0 0.0
        %1683 = vmatpush1.xpose.msra.mxu0 0.0
        %1684 = vmatprep.subr.mxu0 0.0
        %1685 = vmatpush1.xpose.msra.mxu0 0.0
        %1686 = vmatprep.subr.mxu0 0.0
        %1687 = vmatpush1.xpose.msra.mxu0 0.0
        %1688 = vmatprep.subr.mxu0 0.0
        %1689 = vmatpush1.xpose.msra.mxu0 0.0
        %1690 = vmatprep.subr.mxu0 0.0
        %1691 = vmatpush1.xpose.msra.mxu0 0.0
        %1692 = vmatprep.subr.mxu0 0.0
        %1693 = vmatpush1.xpose.msra.mxu0 0.0
        %1694 = vmatprep.mubr.f32.mxu0 0.0
        %1695 = vmatmul.mubr.f32.gmra.mrb[0].mxu0 %v1601
        %v1696 = vpop.f32.mrb[0].mxu0
        %v1697 = vadd.f32 0.0, %v1696
        %v1698 = vpop.f32.mrb[0].mxu0
        %1699 = vmatprep.mubr.f32.mxu0 0.0
        %1700 = vmatmul.mubr.f32.gmra.mrb[0].mxu0 %v1604
        %v1701 = vpop.f32.mrb[0].mxu0
        %v1702 = vadd.f32 0.0, %v1701
        %v1703 = vpop.f32.mrb[0].mxu0
        %1704 = vmatprep.mubr.f32.mxu0 0.0
        %1705 = vmatmul.mubr.f32.gmra.mrb[0].mxu0 %v1607
        %v1706 = vpop.f32.mrb[0].mxu0
        %v1707 = vadd.f32 0.0, %v1706
        %v1708 = vpop.f32.mrb[0].mxu0
        %1709 = vmatprep.mubr.f32.mxu0 0.0
        %1710 = vmatmul.mubr.f32.gmra.mrb[0].mxu0 %v1610
        %v1711 = vpop.f32.mrb[0].mxu0
        %v1712 = vadd.f32 0.0, %v1711
        %v1713 = vpop.f32.mrb[0].mxu0
        %1714 = vmatprep.mubr.f32.mxu0 0.0
        %1715 = vmatmul.mubr.f32.gmra.mrb[0].mxu0 %v1613
        %v1716 = vpop.f32.mrb[0].mxu0
        %v1717 = vadd.f32 0.0, %v1716
        %v1718 = vpop.f32.mrb[0].mxu0
        %1719 = vmatprep.mubr.f32.mxu0 0.0
        %1720 = vmatmul.mubr.f32.gmra.mrb[0].mxu0 %v1616
        %v1721 = vpop.f32.mrb[0].mxu0
        %v1722 = vadd.f32 0.0, %v1721
        %v1723 = vpop.f32.mrb[0].mxu0
        %1724 = vmatprep.mubr.f32.mxu0 0.0
        %1725 = vmatmul.mubr.f32.gmra.mrb[0].mxu0 %v1619
        %v1726 = vpop.f32.mrb[0].mxu0
        %v1727 = vadd.f32 0.0, %v1726
        %v1728 = vpop.f32.mrb[0].mxu0
        %1729 = vmatprep.mubr.f32.mxu0 0.0
        %1730 = vmatmul.mubr.f32.gmra.mrb[0].mxu0 %v1622
        %v1731 = vpop.f32.mrb[0].mxu0
        %v1732 = vadd.f32 0.0, %v1731
        %v1733 = vpop.f32.mrb[0].mxu0
        %1734 = vdwg.mxu0
        %1735 = vxpose.xlu0.b32.start [1/16] %v1697, 128
        %1736 = vxpose.xlu0.b32.cont [2/16] %v1702, 128
        %1737 = vxpose.xlu0.b32.cont [3/16] 0.0, 128
        %1738 = vxpose.xlu0.b32.cont [4/16] 0.0, 128
        %1739 = vxpose.xlu0.b32.cont [5/16] 0.0, 128
        %1740 = vxpose.xlu0.b32.cont [6/16] 0.0, 128
        %1741 = vxpose.xlu0.b32.cont [7/16] 0.0, 128
        %1742 = vxpose.xlu0.b32.cont [8/16] 0.0, 128
        %1743 = vxpose.xlu0.b32.cont [9/16] 0.0, 128
        %1744 = vxpose.xlu0.b32.cont [10/16] 0.0, 128
        %1745 = vxpose.xlu0.b32.cont [11/16] 0.0, 128
        %1746 = vxpose.xlu0.b32.cont [12/16] 0.0, 128
        %1747 = vxpose.xlu0.b32.cont [13/16] 0.0, 128
        %1748 = vxpose.xlu0.b32.cont [14/16] 0.0, 128
        %1749 = vxpose.xlu0.b32.cont [15/16] 0.0, 128
        %1750 = vxpose.xlu0.b32.end [16/16] 0.0, 128
        %v1751 = vpop.trf.xlu0
        %v1752 = vpop.trf.xlu0
        %v1753 = vpop.trf.xlu0
        %v1754 = vpop.trf.xlu0
        %v1755 = vpop.trf.xlu0
        %v1756 = vpop.trf.xlu0
        %v1757 = vpop.trf.xlu0
        %v1758 = vpop.trf.xlu0
        %v1759 = vpop.trf.xlu0
        %v1760 = vpop.trf.xlu0
        %v1761 = vpop.trf.xlu0
        %v1762 = vpop.trf.xlu0
        %v1763 = vpop.trf.xlu0
        %v1764 = vpop.trf.xlu0
        %v1765 = vpop.trf.xlu0
        %v1766 = vpop.trf.xlu0
        %1767 = vxpose.xlu0.b32.start [1/16] %v1707, 128
        %1768 = vxpose.xlu0.b32.cont [2/16] %v1712, 128
        %1769 = vxpose.xlu0.b32.cont [3/16] 0.0, 128
        %1770 = vxpose.xlu0.b32.cont [4/16] 0.0, 128
        %1771 = vxpose.xlu0.b32.cont [5/16] 0.0, 128
        %1772 = vxpose.xlu0.b32.cont [6/16] 0.0, 128
        %1773 = vxpose.xlu0.b32.cont [7/16] 0.0, 128
        %1774 = vxpose.xlu0.b32.cont [8/16] 0.0, 128
        %1775 = vxpose.xlu0.b32.cont [9/16] 0.0, 128
        %1776 = vxpose.xlu0.b32.cont [10/16] 0.0, 128
        %1777 = vxpose.xlu0.b32.cont [11/16] 0.0, 128
        %1778 = vxpose.xlu0.b32.cont [12/16] 0.0, 128
        %1779 = vxpose.xlu0.b32.cont [13/16] 0.0, 128
        %1780 = vxpose.xlu0.b32.cont [14/16] 0.0, 128
        %1781 = vxpose.xlu0.b32.cont [15/16] 0.0, 128
        %1782 = vxpose.xlu0.b32.end [16/16] 0.0, 128
        %v1783 = vpop.trf.xlu0
        %v1784 = vpop.trf.xlu0
        %v1785 = vpop.trf.xlu0
        %v1786 = vpop.trf.xlu0
        %v1787 = vpop.trf.xlu0
        %v1788 = vpop.trf.xlu0
        %v1789 = vpop.trf.xlu0
        %v1790 = vpop.trf.xlu0
        %v1791 = vpop.trf.xlu0
        %v1792 = vpop.trf.xlu0
        %v1793 = vpop.trf.xlu0
        %v1794 = vpop.trf.xlu0
        %v1795 = vpop.trf.xlu0
        %v1796 = vpop.trf.xlu0
        %v1797 = vpop.trf.xlu0
        %v1798 = vpop.trf.xlu0
        %1799 = vxpose.xlu0.b32.start [1/16] %v1717, 128
        %1800 = vxpose.xlu0.b32.cont [2/16] %v1722, 128
        %1801 = vxpose.xlu0.b32.cont [3/16] 0.0, 128
        %1802 = vxpose.xlu0.b32.cont [4/16] 0.0, 128
        %1803 = vxpose.xlu0.b32.cont [5/16] 0.0, 128
        %1804 = vxpose.xlu0.b32.cont [6/16] 0.0, 128
        %1805 = vxpose.xlu0.b32.cont [7/16] 0.0, 128
        %1806 = vxpose.xlu0.b32.cont [8/16] 0.0, 128
        %1807 = vxpose.xlu0.b32.cont [9/16] 0.0, 128
        %1808 = vxpose.xlu0.b32.cont [10/16] 0.0, 128
        %1809 = vxpose.xlu0.b32.cont [11/16] 0.0, 128
        %1810 = vxpose.xlu0.b32.cont [12/16] 0.0, 128
        %1811 = vxpose.xlu0.b32.cont [13/16] 0.0, 128
        %1812 = vxpose.xlu0.b32.cont [14/16] 0.0, 128
        %1813 = vxpose.xlu0.b32.cont [15/16] 0.0, 128
        %1814 = vxpose.xlu0.b32.end [16/16] 0.0, 128
        %v1815 = vpop.trf.xlu0
        %v1816 = vpop.trf.xlu0
        %v1817 = vpop.trf.xlu0
        %v1818 = vpop.trf.xlu0
        %v1819 = vpop.trf.xlu0
        %v1820 = vpop.trf.xlu0
        %v1821 = vpop.trf.xlu0
        %v1822 = vpop.trf.xlu0
        %v1823 = vpop.trf.xlu0
        %v1824 = vpop.trf.xlu0
        %v1825 = vpop.trf.xlu0
        %v1826 = vpop.trf.xlu0
        %v1827 = vpop.trf.xlu0
        %v1828 = vpop.trf.xlu0
        %v1829 = vpop.trf.xlu0
        %v1830 = vpop.trf.xlu0
        %1831 = vxpose.xlu0.b32.start [1/16] %v1727, 128
        %1832 = vxpose.xlu0.b32.cont [2/16] %v1732, 128
        %1833 = vxpose.xlu0.b32.cont [3/16] 0.0, 128
        %1834 = vxpose.xlu0.b32.cont [4/16] 0.0, 128
        %1835 = vxpose.xlu0.b32.cont [5/16] 0.0, 128
        %1836 = vxpose.xlu0.b32.cont [6/16] 0.0, 128
        %1837 = vxpose.xlu0.b32.cont [7/16] 0.0, 128
        %1838 = vxpose.xlu0.b32.cont [8/16] 0.0, 128
        %1839 = vxpose.xlu0.b32.cont [9/16] 0.0, 128
        %1840 = vxpose.xlu0.b32.cont [10/16] 0.0, 128
        %1841 = vxpose.xlu0.b32.cont [11/16] 0.0, 128
        %1842 = vxpose.xlu0.b32.cont [12/16] 0.0, 128
        %1843 = vxpose.xlu0.b32.cont [13/16] 0.0, 128
        %1844 = vxpose.xlu0.b32.cont [14/16] 0.0, 128
        %1845 = vxpose.xlu0.b32.cont [15/16] 0.0, 128
        %1846 = vxpose.xlu0.b32.end [16/16] 0.0, 128
        %v1847 = vpop.trf.xlu0
        %v1848 = vpop.trf.xlu0
        %v1849 = vpop.trf.xlu0
        %v1850 = vpop.trf.xlu0
        %v1851 = vpop.trf.xlu0
        %v1852 = vpop.trf.xlu0
        %v1853 = vpop.trf.xlu0
        %v1854 = vpop.trf.xlu0
        %v1855 = vpop.trf.xlu0
        %v1856 = vpop.trf.xlu0
        %v1857 = vpop.trf.xlu0
        %v1858 = vpop.trf.xlu0
        %v1859 = vpop.trf.xlu0
        %v1860 = vpop.trf.xlu0
        %v1861 = vpop.trf.xlu0
        %v1862 = vpop.trf.xlu0
        %s1863 = scalar_lea.vmem %s140, 128 [#allocation7]
        %1864 = vst.msk [vmem:[%s1863] sm:$0xff] %vm192, %v1751
        %1865 = vst.msk [vmem:[%s1863 + $0x8] sm:$0xff] %vm192, %v1752
        %1866 = vst.msk [vmem:[%s1863 + $0x10] sm:$0xff] %vm192, %v1783
        %1867 = vst.msk [vmem:[%s1863 + $0x18] sm:$0xff] %vm192, %v1784
        %1868 = vst.msk [vmem:[%s1863 + $0x20] sm:$0xff] %vm192, %v1815
        %1869 = vst.msk [vmem:[%s1863 + $0x28] sm:$0xff] %vm192, %v1816
        %1870 = vst.msk [vmem:[%s1863 + $0x30] sm:$0xff] %vm192, %v1847
        %1871 = vst.msk [vmem:[%s1863 + $0x38] sm:$0xff] %vm192, %v1848
        %s1872 = sadd.s32 %s721, 3
        %s1873 = smul.u32 %s1872, 2
        %s1874 = sld [smem:[#allocation3 + %s1873]]
        %s1875 = sadd.s32 %s1873, 1
        %s1876 = sld [smem:[#allocation3 + %s1875]]
        %v1877 = vstv %s1874
        %v1878 = vadd.s32 %v151, %v1877
        %v1879 = vsub.s32 %v1878, 4
        %vm1880 = vcmp.gt.s32.totalorder %v1879, 0
        %v1881 = vsel %vm1880, %v1879, 0
        %vm1882 = vcmp.lt.s32.totalorder %v1881, 15
        %v1883 = vsel %vm1882, %v1881, 15
        %vm1884 = vcmp.eq.s32.totalorder %v148, %v1883
        %vm1885 = vcmp.eq.s32.totalorder %v149, %v1883
        %v1886 = vsel %vm1884, 1, 0
        %v1887 = vsel %vm1885, 1, 0
        %v1888 = vcvt.s32.f32 %v1886
        %v1889 = vcvt.s32.f32 %v1887
        %v1890 = vstv %s1876
        %v1891 = vadd.s32 %v148, %v1890
        %v1892 = vadd.s32 %v149, %v1890
        %v1893 = vsub.s32 %v1891, 4
        %v1894 = vsub.s32 %v1892, 4
        %vm1895 = vcmp.gt.s32.totalorder %v1893, 0
        %v1896 = vsel %vm1895, %v1893, 0
        %vm1897 = vcmp.gt.s32.totalorder %v1894, 0
        %v1898 = vsel %vm1897, %v1894, 0
        %vm1899 = vcmp.lt.s32.totalorder %v1896, 15
        %v1900 = vsel %vm1899, %v1896, 15
        %vm1901 = vcmp.lt.s32.totalorder %v1898, 15
        %v1902 = vsel %vm1901, %v1898, 15
        %vm1903 = vcmp.eq.s32.totalorder %v151, %v1900
        %vm1904 = vcmp.eq.s32.totalorder %v151, %v1902
        %v1905 = vsel %vm1903, 1, 0
        %v1906 = vsel %vm1904, 1, 0
        %v1907 = vcvt.s32.f32 %v1905
        %v1908 = vcvt.s32.f32 %v1906
        %s1909 = scalar_lea.vmem %s122, 192 [#allocation4]
        %v1910 = vld [vmem:[%s1909] sm:$0xff]
        %v1911 = vld [vmem:[%s1909 + $0x8] sm:$0xff]
        %v1912 = vld [vmem:[%s1909 + $0x10] sm:$0xff]
        %v1913 = vld [vmem:[%s1909 + $0x18] sm:$0xff]
        %v1914 = vld [vmem:[%s1909 + $0x20] sm:$0xff]
        %v1915 = vld [vmem:[%s1909 + $0x28] sm:$0xff]
        %v1916 = vld [vmem:[%s1909 + $0x30] sm:$0xff]
        %v1917 = vld [vmem:[%s1909 + $0x38] sm:$0xff]
        %v1919 = vsel %vm192, %v1910, 0
        %v1922 = vsel %vm192, %v1911, 0
        %v1925 = vsel %vm192, %v1912, 0
        %v1928 = vsel %vm192, %v1913, 0
        %v1931 = vsel %vm192, %v1914, 0
        %v1934 = vsel %vm192, %v1915, 0
        %v1937 = vsel %vm192, %v1916, 0
        %v1940 = vsel %vm192, %v1917, 0
        %1942 = vmatprep.subr.mxu0 0.0
        %1943 = vmatpush1.msra.mxu0 %v1888
        %1944 = vmatprep.subr.mxu0 0.0
        %1945 = vmatpush1.msra.mxu0 %v1889
        %1946 = vmatprep.subr.mxu0 0.0
        %1947 = vmatpush1.msra.mxu0 0.0
        %1948 = vmatprep.subr.mxu0 0.0
        %1949 = vmatpush1.msra.mxu0 0.0
        %1950 = vmatprep.subr.mxu0 0.0
        %1951 = vmatpush1.msra.mxu0 0.0
        %1952 = vmatprep.subr.mxu0 0.0
        %1953 = vmatpush1.msra.mxu0 0.0
        %1954 = vmatprep.subr.mxu0 0.0
        %1955 = vmatpush1.msra.mxu0 0.0
        %1956 = vmatprep.subr.mxu0 0.0
        %1957 = vmatpush1.msra.mxu0 0.0
        %1958 = vmatprep.subr.mxu0 0.0
        %1959 = vmatpush1.msra.mxu0 0.0
        %1960 = vmatprep.subr.mxu0 0.0
        %1961 = vmatpush1.msra.mxu0 0.0
        %1962 = vmatprep.subr.mxu0 0.0
        %1963 = vmatpush1.msra.mxu0 0.0
        %1964 = vmatprep.subr.mxu0 0.0
        %1965 = vmatpush1.msra.mxu0 0.0
        %1966 = vmatprep.subr.mxu0 0.0
        %1967 = vmatpush1.msra.mxu0 0.0
        %1968 = vmatprep.subr.mxu0 0.0
        %1969 = vmatpush1.msra.mxu0 0.0
        %1970 = vmatprep.subr.mxu0 0.0
        %1971 = vmatpush1.msra.mxu0 0.0
        %1972 = vmatprep.subr.mxu0 0.0
        %1973 = vmatpush1.msra.mxu0 0.0
        %1974 = vmatprep.subr.mxu0 0.0
        %1975 = vmatpush1.msra.mxu0 0.0
        %1976 = vmatprep.subr.mxu0 0.0
        %1977 = vmatpush1.msra.mxu0 0.0
        %1978 = vmatprep.subr.mxu0 0.0
        %1979 = vmatpush1.msra.mxu0 0.0
        %1980 = vmatprep.subr.mxu0 0.0
        %1981 = vmatpush1.msra.mxu0 0.0
        %1982 = vmatprep.subr.mxu0 0.0
        %1983 = vmatpush1.msra.mxu0 0.0
        %1984 = vmatprep.subr.mxu0 0.0
        %1985 = vmatpush1.msra.mxu0 0.0
        %1986 = vmatprep.subr.mxu0 0.0
        %1987 = vmatpush1.msra.mxu0 0.0
        %1988 = vmatprep.subr.mxu0 0.0
        %1989 = vmatpush1.msra.mxu0 0.0
        %1990 = vmatprep.subr.mxu0 0.0
        %1991 = vmatpush1.msra.mxu0 0.0
        %1992 = vmatprep.subr.mxu0 0.0
        %1993 = vmatpush1.msra.mxu0 0.0
        %1994 = vmatprep.subr.mxu0 0.0
        %1995 = vmatpush1.msra.mxu0 0.0
        %1996 = vmatprep.subr.mxu0 0.0
        %1997 = vmatpush1.msra.mxu0 0.0
        %1998 = vmatprep.subr.mxu0 0.0
        %1999 = vmatpush1.msra.mxu0 0.0
        %2000 = vmatprep.subr.mxu0 0.0
        %2001 = vmatpush1.msra.mxu0 0.0
        %2002 = vmatprep.subr.mxu0 0.0
        %2003 = vmatpush1.msra.mxu0 0.0
        %2004 = vmatprep.subr.mxu0 0.0
        %2005 = vmatpush1.msra.mxu0 0.0
        %2006 = vmatprep.mubr.f32.mxu0 0.0
        %2007 = vmatmul.mubr.f32.gmra.mrb[0].mxu0 %v1919
        %v2008 = vpop.f32.mrb[0].mxu0
        %v2009 = vadd.f32 0.0, %v2008
        %v2010 = vpop.f32.mrb[0].mxu0
        %2011 = vmatprep.mubr.f32.mxu0 0.0
        %2012 = vmatmul.mubr.f32.gmra.mrb[0].mxu0 %v1922
        %v2013 = vpop.f32.mrb[0].mxu0
        %v2014 = vadd.f32 0.0, %v2013
        %v2015 = vpop.f32.mrb[0].mxu0
        %2016 = vmatprep.mubr.f32.mxu0 0.0
        %2017 = vmatmul.mubr.f32.gmra.mrb[0].mxu0 %v1925
        %v2018 = vpop.f32.mrb[0].mxu0
        %v2019 = vadd.f32 0.0, %v2018
        %v2020 = vpop.f32.mrb[0].mxu0
        %2021 = vmatprep.mubr.f32.mxu0 0.0
        %2022 = vmatmul.mubr.f32.gmra.mrb[0].mxu0 %v1928
        %v2023 = vpop.f32.mrb[0].mxu0
        %v2024 = vadd.f32 0.0, %v2023
        %v2025 = vpop.f32.mrb[0].mxu0
        %2026 = vmatprep.mubr.f32.mxu0 0.0
        %2027 = vmatmul.mubr.f32.gmra.mrb[0].mxu0 %v1931
        %v2028 = vpop.f32.mrb[0].mxu0
        %v2029 = vadd.f32 0.0, %v2028
        %v2030 = vpop.f32.mrb[0].mxu0
        %2031 = vmatprep.mubr.f32.mxu0 0.0
        %2032 = vmatmul.mubr.f32.gmra.mrb[0].mxu0 %v1934
        %v2033 = vpop.f32.mrb[0].mxu0
        %v2034 = vadd.f32 0.0, %v2033
        %v2035 = vpop.f32.mrb[0].mxu0
        %2036 = vmatprep.mubr.f32.mxu0 0.0
        %2037 = vmatmul.mubr.f32.gmra.mrb[0].mxu0 %v1937
        %v2038 = vpop.f32.mrb[0].mxu0
        %v2039 = vadd.f32 0.0, %v2038
        %v2040 = vpop.f32.mrb[0].mxu0
        %2041 = vmatprep.mubr.f32.mxu0 0.0
        %2042 = vmatmul.mubr.f32.gmra.mrb[0].mxu0 %v1940
        %v2043 = vpop.f32.mrb[0].mxu0
        %v2044 = vadd.f32 0.0, %v2043
        %v2045 = vpop.f32.mrb[0].mxu0
        %2046 = vdwg.mxu0
        %2047 = vxpose.xlu0.b32.start [1/16] %v2009, 128
        %2048 = vxpose.xlu0.b32.cont [2/16] %v2014, 128
        %2049 = vxpose.xlu0.b32.cont [3/16] 0.0, 128
        %2050 = vxpose.xlu0.b32.cont [4/16] 0.0, 128
        %2051 = vxpose.xlu0.b32.cont [5/16] 0.0, 128
        %2052 = vxpose.xlu0.b32.cont [6/16] 0.0, 128
        %2053 = vxpose.xlu0.b32.cont [7/16] 0.0, 128
        %2054 = vxpose.xlu0.b32.cont [8/16] 0.0, 128
        %2055 = vxpose.xlu0.b32.cont [9/16] 0.0, 128
        %2056 = vxpose.xlu0.b32.cont [10/16] 0.0, 128
        %2057 = vxpose.xlu0.b32.cont [11/16] 0.0, 128
        %2058 = vxpose.xlu0.b32.cont [12/16] 0.0, 128
        %2059 = vxpose.xlu0.b32.cont [13/16] 0.0, 128
        %2060 = vxpose.xlu0.b32.cont [14/16] 0.0, 128
        %2061 = vxpose.xlu0.b32.cont [15/16] 0.0, 128
        %2062 = vxpose.xlu0.b32.end [16/16] 0.0, 128
        %v2063 = vpop.trf.xlu0
        %v2064 = vpop.trf.xlu0
        %v2065 = vpop.trf.xlu0
        %v2066 = vpop.trf.xlu0
        %v2067 = vpop.trf.xlu0
        %v2068 = vpop.trf.xlu0
        %v2069 = vpop.trf.xlu0
        %v2070 = vpop.trf.xlu0
        %v2071 = vpop.trf.xlu0
        %v2072 = vpop.trf.xlu0
        %v2073 = vpop.trf.xlu0
        %v2074 = vpop.trf.xlu0
        %v2075 = vpop.trf.xlu0
        %v2076 = vpop.trf.xlu0
        %v2077 = vpop.trf.xlu0
        %v2078 = vpop.trf.xlu0
        %2079 = vxpose.xlu0.b32.start [1/16] %v2019, 128
        %2080 = vxpose.xlu0.b32.cont [2/16] %v2024, 128
        %2081 = vxpose.xlu0.b32.cont [3/16] 0.0, 128
        %2082 = vxpose.xlu0.b32.cont [4/16] 0.0, 128
        %2083 = vxpose.xlu0.b32.cont [5/16] 0.0, 128
        %2084 = vxpose.xlu0.b32.cont [6/16] 0.0, 128
        %2085 = vxpose.xlu0.b32.cont [7/16] 0.0, 128
        %2086 = vxpose.xlu0.b32.cont [8/16] 0.0, 128
        %2087 = vxpose.xlu0.b32.cont [9/16] 0.0, 128
        %2088 = vxpose.xlu0.b32.cont [10/16] 0.0, 128
        %2089 = vxpose.xlu0.b32.cont [11/16] 0.0, 128
        %2090 = vxpose.xlu0.b32.cont [12/16] 0.0, 128
        %2091 = vxpose.xlu0.b32.cont [13/16] 0.0, 128
        %2092 = vxpose.xlu0.b32.cont [14/16] 0.0, 128
        %2093 = vxpose.xlu0.b32.cont [15/16] 0.0, 128
        %2094 = vxpose.xlu0.b32.end [16/16] 0.0, 128
        %v2095 = vpop.trf.xlu0
        %v2096 = vpop.trf.xlu0
        %v2097 = vpop.trf.xlu0
        %v2098 = vpop.trf.xlu0
        %v2099 = vpop.trf.xlu0
        %v2100 = vpop.trf.xlu0
        %v2101 = vpop.trf.xlu0
        %v2102 = vpop.trf.xlu0
        %v2103 = vpop.trf.xlu0
        %v2104 = vpop.trf.xlu0
        %v2105 = vpop.trf.xlu0
        %v2106 = vpop.trf.xlu0
        %v2107 = vpop.trf.xlu0
        %v2108 = vpop.trf.xlu0
        %v2109 = vpop.trf.xlu0
        %v2110 = vpop.trf.xlu0
        %2111 = vxpose.xlu0.b32.start [1/16] %v2029, 128
        %2112 = vxpose.xlu0.b32.cont [2/16] %v2034, 128
        %2113 = vxpose.xlu0.b32.cont [3/16] 0.0, 128
        %2114 = vxpose.xlu0.b32.cont [4/16] 0.0, 128
        %2115 = vxpose.xlu0.b32.cont [5/16] 0.0, 128
        %2116 = vxpose.xlu0.b32.cont [6/16] 0.0, 128
        %2117 = vxpose.xlu0.b32.cont [7/16] 0.0, 128
        %2118 = vxpose.xlu0.b32.cont [8/16] 0.0, 128
        %2119 = vxpose.xlu0.b32.cont [9/16] 0.0, 128
        %2120 = vxpose.xlu0.b32.cont [10/16] 0.0, 128
        %2121 = vxpose.xlu0.b32.cont [11/16] 0.0, 128
        %2122 = vxpose.xlu0.b32.cont [12/16] 0.0, 128
        %2123 = vxpose.xlu0.b32.cont [13/16] 0.0, 128
        %2124 = vxpose.xlu0.b32.cont [14/16] 0.0, 128
        %2125 = vxpose.xlu0.b32.cont [15/16] 0.0, 128
        %2126 = vxpose.xlu0.b32.end [16/16] 0.0, 128
        %v2127 = vpop.trf.xlu0
        %v2128 = vpop.trf.xlu0
        %v2129 = vpop.trf.xlu0
        %v2130 = vpop.trf.xlu0
        %v2131 = vpop.trf.xlu0
        %v2132 = vpop.trf.xlu0
        %v2133 = vpop.trf.xlu0
        %v2134 = vpop.trf.xlu0
        %v2135 = vpop.trf.xlu0
        %v2136 = vpop.trf.xlu0
        %v2137 = vpop.trf.xlu0
        %v2138 = vpop.trf.xlu0
        %v2139 = vpop.trf.xlu0
        %v2140 = vpop.trf.xlu0
        %v2141 = vpop.trf.xlu0
        %v2142 = vpop.trf.xlu0
        %2143 = vxpose.xlu0.b32.start [1/16] %v2039, 128
        %2144 = vxpose.xlu0.b32.cont [2/16] %v2044, 128
        %2145 = vxpose.xlu0.b32.cont [3/16] 0.0, 128
        %2146 = vxpose.xlu0.b32.cont [4/16] 0.0, 128
        %2147 = vxpose.xlu0.b32.cont [5/16] 0.0, 128
        %2148 = vxpose.xlu0.b32.cont [6/16] 0.0, 128
        %2149 = vxpose.xlu0.b32.cont [7/16] 0.0, 128
        %2150 = vxpose.xlu0.b32.cont [8/16] 0.0, 128
        %2151 = vxpose.xlu0.b32.cont [9/16] 0.0, 128
        %2152 = vxpose.xlu0.b32.cont [10/16] 0.0, 128
        %2153 = vxpose.xlu0.b32.cont [11/16] 0.0, 128
        %2154 = vxpose.xlu0.b32.cont [12/16] 0.0, 128
        %2155 = vxpose.xlu0.b32.cont [13/16] 0.0, 128
        %2156 = vxpose.xlu0.b32.cont [14/16] 0.0, 128
        %2157 = vxpose.xlu0.b32.cont [15/16] 0.0, 128
        %2158 = vxpose.xlu0.b32.end [16/16] 0.0, 128
        %v2159 = vpop.trf.xlu0
        %v2160 = vpop.trf.xlu0
        %v2161 = vpop.trf.xlu0
        %v2162 = vpop.trf.xlu0
        %v2163 = vpop.trf.xlu0
        %v2164 = vpop.trf.xlu0
        %v2165 = vpop.trf.xlu0
        %v2166 = vpop.trf.xlu0
        %v2167 = vpop.trf.xlu0
        %v2168 = vpop.trf.xlu0
        %v2169 = vpop.trf.xlu0
        %v2170 = vpop.trf.xlu0
        %v2171 = vpop.trf.xlu0
        %v2172 = vpop.trf.xlu0
        %v2173 = vpop.trf.xlu0
        %v2174 = vpop.trf.xlu0
        %v2176 = vsel %vm192, %v2063, 0
        %v2179 = vsel %vm192, %v2064, 0
        %v2182 = vsel %vm192, %v2095, 0
        %v2185 = vsel %vm192, %v2096, 0
        %v2188 = vsel %vm192, %v2127, 0
        %v2191 = vsel %vm192, %v2128, 0
        %v2194 = vsel %vm192, %v2159, 0
        %v2197 = vsel %vm192, %v2160, 0
        %v2200 = vsel %vm192, %v1907, 0
        %v2203 = vsel %vm192, %v1908, 0
        %2205 = vmatprep.subr.mxu0 0.0
        %2206 = vmatpush1.xpose.msra.mxu0 %v2200
        %2207 = vmatprep.subr.mxu0 0.0
        %2208 = vmatpush1.xpose.msra.mxu0 %v2203
        %2209 = vmatprep.subr.mxu0 0.0
        %2210 = vmatpush1.xpose.msra.mxu0 0.0
        %2211 = vmatprep.subr.mxu0 0.0
        %2212 = vmatpush1.xpose.msra.mxu0 0.0
        %2213 = vmatprep.subr.mxu0 0.0
        %2214 = vmatpush1.xpose.msra.mxu0 0.0
        %2215 = vmatprep.subr.mxu0 0.0
        %2216 = vmatpush1.xpose.msra.mxu0 0.0
        %2217 = vmatprep.subr.mxu0 0.0
        %2218 = vmatpush1.xpose.msra.mxu0 0.0
        %2219 = vmatprep.subr.mxu0 0.0
        %2220 = vmatpush1.xpose.msra.mxu0 0.0
        %2221 = vmatprep.subr.mxu0 0.0
        %2222 = vmatpush1.xpose.msra.mxu0 0.0
        %2223 = vmatprep.subr.mxu0 0.0
        %2224 = vmatpush1.xpose.msra.mxu0 0.0
        %2225 = vmatprep.subr.mxu0 0.0
        %2226 = vmatpush1.xpose.msra.mxu0 0.0
        %2227 = vmatprep.subr.mxu0 0.0
        %2228 = vmatpush1.xpose.msra.mxu0 0.0
        %2229 = vmatprep.subr.mxu0 0.0
        %2230 = vmatpush1.xpose.msra.mxu0 0.0
        %2231 = vmatprep.subr.mxu0 0.0
        %2232 = vmatpush1.xpose.msra.mxu0 0.0
        %2233 = vmatprep.subr.mxu0 0.0
        %2234 = vmatpush1.xpose.msra.mxu0 0.0
        %2235 = vmatprep.subr.mxu0 0.0
        %2236 = vmatpush1.xpose.msra.mxu0 0.0
        %2237 = vmatprep.subr.mxu0 0.0
        %2238 = vmatpush1.xpose.msra.mxu0 0.0
        %2239 = vmatprep.subr.mxu0 0.0
        %2240 = vmatpush1.xpose.msra.mxu0 0.0
        %2241 = vmatprep.subr.mxu0 0.0
        %2242 = vmatpush1.xpose.msra.mxu0 0.0
        %2243 = vmatprep.subr.mxu0 0.0
        %2244 = vmatpush1.xpose.msra.mxu0 0.0
        %2245 = vmatprep.subr.mxu0 0.0
        %2246 = vmatpush1.xpose.msra.mxu0 0.0
        %2247 = vmatprep.subr.mxu0 0.0
        %2248 = vmatpush1.xpose.msra.mxu0 0.0
        %2249 = vmatprep.subr.mxu0 0.0
        %2250 = vmatpush1.xpose.msra.mxu0 0.0
        %2251 = vmatprep.subr.mxu0 0.0
        %2252 = vmatpush1.xpose.msra.mxu0 0.0
        %2253 = vmatprep.subr.mxu0 0.0
        %2254 = vmatpush1.xpose.msra.mxu0 0.0
        %2255 = vmatprep.subr.mxu0 0.0
        %2256 = vmatpush1.xpose.msra.mxu0 0.0
        %2257 = vmatprep.subr.mxu0 0.0
        %2258 = vmatpush1.xpose.msra.mxu0 0.0
        %2259 = vmatprep.subr.mxu0 0.0
        %2260 = vmatpush1.xpose.msra.mxu0 0.0
        %2261 = vmatprep.subr.mxu0 0.0
        %2262 = vmatpush1.xpose.msra.mxu0 0.0
        %2263 = vmatprep.subr.mxu0 0.0
        %2264 = vmatpush1.xpose.msra.mxu0 0.0
        %2265 = vmatprep.subr.mxu0 0.0
        %2266 = vmatpush1.xpose.msra.mxu0 0.0
        %2267 = vmatprep.subr.mxu0 0.0
        %2268 = vmatpush1.xpose.msra.mxu0 0.0
        %2269 = vmatprep.mubr.f32.mxu0 0.0
        %2270 = vmatmul.mubr.f32.gmra.mrb[0].mxu0 %v2176
        %v2271 = vpop.f32.mrb[0].mxu0
        %v2272 = vadd.f32 0.0, %v2271
        %v2273 = vpop.f32.mrb[0].mxu0
        %2274 = vmatprep.mubr.f32.mxu0 0.0
        %2275 = vmatmul.mubr.f32.gmra.mrb[0].mxu0 %v2179
        %v2276 = vpop.f32.mrb[0].mxu0
        %v2277 = vadd.f32 0.0, %v2276
        %v2278 = vpop.f32.mrb[0].mxu0
        %2279 = vmatprep.mubr.f32.mxu0 0.0
        %2280 = vmatmul.mubr.f32.gmra.mrb[0].mxu0 %v2182
        %v2281 = vpop.f32.mrb[0].mxu0
        %v2282 = vadd.f32 0.0, %v2281
        %v2283 = vpop.f32.mrb[0].mxu0
        %2284 = vmatprep.mubr.f32.mxu0 0.0
        %2285 = vmatmul.mubr.f32.gmra.mrb[0].mxu0 %v2185
        %v2286 = vpop.f32.mrb[0].mxu0
        %v2287 = vadd.f32 0.0, %v2286
        %v2288 = vpop.f32.mrb[0].mxu0
        %2289 = vmatprep.mubr.f32.mxu0 0.0
        %2290 = vmatmul.mubr.f32.gmra.mrb[0].mxu0 %v2188
        %v2291 = vpop.f32.mrb[0].mxu0
        %v2292 = vadd.f32 0.0, %v2291
        %v2293 = vpop.f32.mrb[0].mxu0
        %2294 = vmatprep.mubr.f32.mxu0 0.0
        %2295 = vmatmul.mubr.f32.gmra.mrb[0].mxu0 %v2191
        %v2296 = vpop.f32.mrb[0].mxu0
        %v2297 = vadd.f32 0.0, %v2296
        %v2298 = vpop.f32.mrb[0].mxu0
        %2299 = vmatprep.mubr.f32.mxu0 0.0
        %2300 = vmatmul.mubr.f32.gmra.mrb[0].mxu0 %v2194
        %v2301 = vpop.f32.mrb[0].mxu0
        %v2302 = vadd.f32 0.0, %v2301
        %v2303 = vpop.f32.mrb[0].mxu0
        %2304 = vmatprep.mubr.f32.mxu0 0.0
        %2305 = vmatmul.mubr.f32.gmra.mrb[0].mxu0 %v2197
        %v2306 = vpop.f32.mrb[0].mxu0
        %v2307 = vadd.f32 0.0, %v2306
        %v2308 = vpop.f32.mrb[0].mxu0
        %2309 = vdwg.mxu0
        %2310 = vxpose.xlu0.b32.start [1/16] %v2272, 128
        %2311 = vxpose.xlu0.b32.cont [2/16] %v2277, 128
        %2312 = vxpose.xlu0.b32.cont [3/16] 0.0, 128
        %2313 = vxpose.xlu0.b32.cont [4/16] 0.0, 128
        %2314 = vxpose.xlu0.b32.cont [5/16] 0.0, 128
        %2315 = vxpose.xlu0.b32.cont [6/16] 0.0, 128
        %2316 = vxpose.xlu0.b32.cont [7/16] 0.0, 128
        %2317 = vxpose.xlu0.b32.cont [8/16] 0.0, 128
        %2318 = vxpose.xlu0.b32.cont [9/16] 0.0, 128
        %2319 = vxpose.xlu0.b32.cont [10/16] 0.0, 128
        %2320 = vxpose.xlu0.b32.cont [11/16] 0.0, 128
        %2321 = vxpose.xlu0.b32.cont [12/16] 0.0, 128
        %2322 = vxpose.xlu0.b32.cont [13/16] 0.0, 128
        %2323 = vxpose.xlu0.b32.cont [14/16] 0.0, 128
        %2324 = vxpose.xlu0.b32.cont [15/16] 0.0, 128
        %2325 = vxpose.xlu0.b32.end [16/16] 0.0, 128
        %v2326 = vpop.trf.xlu0
        %v2327 = vpop.trf.xlu0
        %v2328 = vpop.trf.xlu0
        %v2329 = vpop.trf.xlu0
        %v2330 = vpop.trf.xlu0
        %v2331 = vpop.trf.xlu0
        %v2332 = vpop.trf.xlu0
        %v2333 = vpop.trf.xlu0
        %v2334 = vpop.trf.xlu0
        %v2335 = vpop.trf.xlu0
        %v2336 = vpop.trf.xlu0
        %v2337 = vpop.trf.xlu0
        %v2338 = vpop.trf.xlu0
        %v2339 = vpop.trf.xlu0
        %v2340 = vpop.trf.xlu0
        %v2341 = vpop.trf.xlu0
        %2342 = vxpose.xlu0.b32.start [1/16] %v2282, 128
        %2343 = vxpose.xlu0.b32.cont [2/16] %v2287, 128
        %2344 = vxpose.xlu0.b32.cont [3/16] 0.0, 128
        %2345 = vxpose.xlu0.b32.cont [4/16] 0.0, 128
        %2346 = vxpose.xlu0.b32.cont [5/16] 0.0, 128
        %2347 = vxpose.xlu0.b32.cont [6/16] 0.0, 128
        %2348 = vxpose.xlu0.b32.cont [7/16] 0.0, 128
        %2349 = vxpose.xlu0.b32.cont [8/16] 0.0, 128
        %2350 = vxpose.xlu0.b32.cont [9/16] 0.0, 128
        %2351 = vxpose.xlu0.b32.cont [10/16] 0.0, 128
        %2352 = vxpose.xlu0.b32.cont [11/16] 0.0, 128
        %2353 = vxpose.xlu0.b32.cont [12/16] 0.0, 128
        %2354 = vxpose.xlu0.b32.cont [13/16] 0.0, 128
        %2355 = vxpose.xlu0.b32.cont [14/16] 0.0, 128
        %2356 = vxpose.xlu0.b32.cont [15/16] 0.0, 128
        %2357 = vxpose.xlu0.b32.end [16/16] 0.0, 128
        %v2358 = vpop.trf.xlu0
        %v2359 = vpop.trf.xlu0
        %v2360 = vpop.trf.xlu0
        %v2361 = vpop.trf.xlu0
        %v2362 = vpop.trf.xlu0
        %v2363 = vpop.trf.xlu0
        %v2364 = vpop.trf.xlu0
        %v2365 = vpop.trf.xlu0
        %v2366 = vpop.trf.xlu0
        %v2367 = vpop.trf.xlu0
        %v2368 = vpop.trf.xlu0
        %v2369 = vpop.trf.xlu0
        %v2370 = vpop.trf.xlu0
        %v2371 = vpop.trf.xlu0
        %v2372 = vpop.trf.xlu0
        %v2373 = vpop.trf.xlu0
        %2374 = vxpose.xlu0.b32.start [1/16] %v2292, 128
        %2375 = vxpose.xlu0.b32.cont [2/16] %v2297, 128
        %2376 = vxpose.xlu0.b32.cont [3/16] 0.0, 128
        %2377 = vxpose.xlu0.b32.cont [4/16] 0.0, 128
        %2378 = vxpose.xlu0.b32.cont [5/16] 0.0, 128
        %2379 = vxpose.xlu0.b32.cont [6/16] 0.0, 128
        %2380 = vxpose.xlu0.b32.cont [7/16] 0.0, 128
        %2381 = vxpose.xlu0.b32.cont [8/16] 0.0, 128
        %2382 = vxpose.xlu0.b32.cont [9/16] 0.0, 128
        %2383 = vxpose.xlu0.b32.cont [10/16] 0.0, 128
        %2384 = vxpose.xlu0.b32.cont [11/16] 0.0, 128
        %2385 = vxpose.xlu0.b32.cont [12/16] 0.0, 128
        %2386 = vxpose.xlu0.b32.cont [13/16] 0.0, 128
        %2387 = vxpose.xlu0.b32.cont [14/16] 0.0, 128
        %2388 = vxpose.xlu0.b32.cont [15/16] 0.0, 128
        %2389 = vxpose.xlu0.b32.end [16/16] 0.0, 128
        %v2390 = vpop.trf.xlu0
        %v2391 = vpop.trf.xlu0
        %v2392 = vpop.trf.xlu0
        %v2393 = vpop.trf.xlu0
        %v2394 = vpop.trf.xlu0
        %v2395 = vpop.trf.xlu0
        %v2396 = vpop.trf.xlu0
        %v2397 = vpop.trf.xlu0
        %v2398 = vpop.trf.xlu0
        %v2399 = vpop.trf.xlu0
        %v2400 = vpop.trf.xlu0
        %v2401 = vpop.trf.xlu0
        %v2402 = vpop.trf.xlu0
        %v2403 = vpop.trf.xlu0
        %v2404 = vpop.trf.xlu0
        %v2405 = vpop.trf.xlu0
        %2406 = vxpose.xlu0.b32.start [1/16] %v2302, 128
        %2407 = vxpose.xlu0.b32.cont [2/16] %v2307, 128
        %2408 = vxpose.xlu0.b32.cont [3/16] 0.0, 128
        %2409 = vxpose.xlu0.b32.cont [4/16] 0.0, 128
        %2410 = vxpose.xlu0.b32.cont [5/16] 0.0, 128
        %2411 = vxpose.xlu0.b32.cont [6/16] 0.0, 128
        %2412 = vxpose.xlu0.b32.cont [7/16] 0.0, 128
        %2413 = vxpose.xlu0.b32.cont [8/16] 0.0, 128
        %2414 = vxpose.xlu0.b32.cont [9/16] 0.0, 128
        %2415 = vxpose.xlu0.b32.cont [10/16] 0.0, 128
        %2416 = vxpose.xlu0.b32.cont [11/16] 0.0, 128
        %2417 = vxpose.xlu0.b32.cont [12/16] 0.0, 128
        %2418 = vxpose.xlu0.b32.cont [13/16] 0.0, 128
        %2419 = vxpose.xlu0.b32.cont [14/16] 0.0, 128
        %2420 = vxpose.xlu0.b32.cont [15/16] 0.0, 128
        %2421 = vxpose.xlu0.b32.end [16/16] 0.0, 128
        %v2422 = vpop.trf.xlu0
        %v2423 = vpop.trf.xlu0
        %v2424 = vpop.trf.xlu0
        %v2425 = vpop.trf.xlu0
        %v2426 = vpop.trf.xlu0
        %v2427 = vpop.trf.xlu0
        %v2428 = vpop.trf.xlu0
        %v2429 = vpop.trf.xlu0
        %v2430 = vpop.trf.xlu0
        %v2431 = vpop.trf.xlu0
        %v2432 = vpop.trf.xlu0
        %v2433 = vpop.trf.xlu0
        %v2434 = vpop.trf.xlu0
        %v2435 = vpop.trf.xlu0
        %v2436 = vpop.trf.xlu0
        %v2437 = vpop.trf.xlu0
        %s2438 = scalar_lea.vmem %s140, 192 [#allocation7]
        %2439 = vst.msk [vmem:[%s2438] sm:$0xff] %vm192, %v2326
        %2440 = vst.msk [vmem:[%s2438 + $0x8] sm:$0xff] %vm192, %v2327
        %2441 = vst.msk [vmem:[%s2438 + $0x10] sm:$0xff] %vm192, %v2358
        %2442 = vst.msk [vmem:[%s2438 + $0x18] sm:$0xff] %vm192, %v2359
        %2443 = vst.msk [vmem:[%s2438 + $0x20] sm:$0xff] %vm192, %v2390
        %2444 = vst.msk [vmem:[%s2438 + $0x28] sm:$0xff] %vm192, %v2391
        %2445 = vst.msk [vmem:[%s2438 + $0x30] sm:$0xff] %vm192, %v2422
        %2446 = vst.msk [vmem:[%s2438 + $0x38] sm:$0xff] %vm192, %v2423
        %s2447 = sand.u32 %s57, 1
        %s2448 = scalar_lea.sflag [#allocation6], %s2447
        %s2449 = sand.u32 %s57, 1
        %s2450 = smul.addr %s2449, 256
        %s2451 = scalar_lea.vmem [#allocation7], %s2450
        // Predicated region
        $region29: #{tpu_custom_call.1} parent=23 // pred_check
          %p2452 = pneg %p67
        $region30: #{tpu_custom_call.1} parent=23 // pred_check_branch
          %2454 = sbr.rel (%p2452) target = $region32
        $region31: #{tpu_custom_call.1} parent=23 // pred_region
          %s2455 = smul.u32 4, %s23
          %s2457 = ssub.s32 4096, 4096
          %2458 = vsyncadd %s2448, %s2457
          %s2459 = smul.addr %s2455, 8
          %s2460 = smul.addr %s2459, 128
          %s2461 = scalar_lea.hbm %s2, %s2460
          %s2462 = sshll.u32 %s2451, 4
          %s2463 = int_to_ptr.vmem [resolvable:$true] %s2462
          %2468 = dma.vmem_to_hbm [thread:$0]  %s2463, 4096, %s2461, %s2448, 128, 128, 8
        $region32: #{tpu_custom_call.1} parent=23 // pred_fallthru
          _
      $region24: #{tpu_custom_call.1} parent=5 // pred_fallthru
        _
      %p2469 = scmp.le.s32.totalorder 2, %s18
      // Predicated region
      $region33: #{tpu_custom_call.1} parent=5 // pred_check
        %p2470 = pneg %p2469
      $region34: #{tpu_custom_call.1} parent=5 // pred_check_branch
        %2472 = sbr.rel (%p2470) target = $region36
      $region35: #{tpu_custom_call.1} parent=5 // pred_region
        %s2473 = ssub.s32 %s18, 2
        // Predicated region
        $region37: #{tpu_custom_call.1} parent=35 // pred_check
          %p2474 = pneg %p73
        $region38: #{tpu_custom_call.1} parent=35 // pred_check_branch
          %2476 = sbr.rel (%p2474) target = $region40
        $region39: #{tpu_custom_call.1} parent=35 // pred_region
          %s2477 = sand.u32 %s58, 1
          %s2478 = scalar_lea.sflag [#allocation6], %s2477
          %s2479 = sand.u32 %s58, 1
          %s2480 = smul.addr %s2479, 256
          %s2481 = scalar_lea.vmem [#allocation7], %s2480
          %2482 = dma.done %s2478, 4096
        $region40: #{tpu_custom_call.1} parent=35 // pred_fallthru
          _
      $region36: #{tpu_custom_call.1} parent=5 // pred_fallthru
        _
    $region6: #{tpu_custom_call.1} parent=1 // loop_footer
      %s22 = sadd.s32 1, %s18
    $region7: #{tpu_custom_call.1} parent=1 // loop_footer_branch
      %17 = sbr.rel target = $region3
    $region8: #{tpu_custom_call.1} parent=1 // loop_exit
      _
    %2483 = vsyncpa [#allocation5], 1
    %s2484 = scalar_lea.sflag [#allocation5], 1
    %2485 = vsyncpa %s2484, 1
    %2486 = vsyncpa [#allocation6], 1
    %s2487 = scalar_lea.sflag [#allocation6], 1
    %2488 = vsyncpa %s2487, 1

</llo_original>
